<compile_context>
chip_gen: v7x
topology: tpu7x:2x2x1
jax: 0.10.0
libtpu: 0.0.40
codegen_flags: <defaults>
</compile_context>

<pallas_src>
import numpy as np
import jax
import jax.numpy as jnp
from jax import lax
from jax.experimental import pallas as pl
from jax.experimental.pallas import tpu as pltpu


# ------------------------------ host-side constants ---------------------------

def _build_masks(H, W):
    """(12, H*W) f32 masks + (H*W, 1) stat column, all derived only from (H, W)."""
    P = H * W
    h = np.arange(P) // W
    w = np.arange(P) % W
    rows = [(h % 2 == 0) & (w % 2 == 0)]                    # row 0: pool grid / parity (0,0)
    for kh in range(3):                                      # rows 1..8: non-centre conv taps
        for kw in range(3):
            if (kh, kw) == (1, 1):
                continue
            sh, sw = h + 2 * (kh - 1), w + 2 * (kw - 1)
            rows.append((sh >= 0) & (sh < H) & (sw >= 0) & (sw < W))
    for dh, dw in [(0, 1), (1, 0), (1, 1)]:                  # rows 9..11: upconv parities
        rows.append((h % 2 == dh) & (w % 2 == dw))
    masks = np.stack(rows).astype(np.float32)                # (12, P)
    inv_pp = 1.0 / float((H // 2) * (W // 2))
    pmcol = (masks[0] * inv_pp).reshape(P, 1).astype(np.float32)   # mask + 1/(Hp*Wp) folded in
    return masks, pmcol


def _choose_batch_block(N, max_nb=8):
    """Largest divisor of N that keeps >=2 grid steps (v7x: 2 TCs) and bounds unroll size."""
    cap = min(max_nb, max(1, (N + 1) // 2))
    nb = 1
    for d in range(1, cap + 1):
        if N % d == 0:
            nb = d
    return nb


# ------------------------------ fused kernel ----------------------------------

def _make_kernel(H, W, Cin, Co, Nb, out_dtype):
    """Per-grid-step fused kernel; all sizes are static Python ints."""
    P = H * W
    eps = 1e-5        # nn.InstanceNorm2d default
    neg_slope = 0.01  # nn.LeakyReLU default
    TAPS = [(kh, kw) for kh in range(3) for kw in range(3)]

    def fetch(a, k):
        # fetch(a, k)[:, p] == a[:, (p + k) % P] : circular lane shift (XLU rotate).
        s = (-k) % P
        if s == 0:
            return a
        return pltpu.roll(a, shift=s, axis=1)

    def kernel(x_ref, masks_ref, pmcol_ref, w1_ref, w2_ref, wu_ref, bu_ref, o_ref):
        masks = masks_ref[...]                      # (12, P) resident constants
        pmcol = pmcol_ref[...]                      # (P, 1)  pool_mask / (Hp*Wp)
        pool_m = masks[0:1, :]
        tap_m = {}
        row = 1
        for t, (kh, kw) in enumerate(TAPS):
            if (kh, kw) == (1, 1):
                continue
            tap_m[t] = masks[row:row + 1, :]
            row += 1
        par_m = {0: pool_m, 1: masks[9:10, :], 2: masks[10:11, :], 3: masks[11:12, :]}

        w1 = w1_ref[...]                            # (9*Co, Cin)
        w2 = w2_ref[...]                            # (9*Co, Co)
        wu = wu_ref[...]                            # (4*Cin, Co)
        bu = bu_ref[...]                            # (Cin, 1)

        def conv_in_lrelu(inp, w_stk):
            # Conv3x3(pad=1) on the stride-2 embedded grid as ONE matmul:
            #   Z[t*Co:(t+1)*Co] = W_t @ inp; then shift / mask / accumulate the 9 tap blocks.
            z = jnp.dot(w_stk, inp, preferred_element_type=jnp.float32)   # (9*Co, P)
            acc = z[4 * Co:5 * Co, :]               # centre tap: shift 0, always valid
            for t, (kh, kw) in enumerate(TAPS):
                if t == 4:
                    continue
                oh, ow = kh - 1, kw - 1
                acc = acc + tap_m[t] * fetch(z[t * Co:(t + 1) * Co, :],
                                             2 * oh * W + 2 * ow)
            # InstanceNorm over the Hp*Wp valid pooled lanes; reductions as MXU mat-vecs
            # (mask & divisor folded into pmcol), two-pass variance for numerical safety.
            # Conv bias omitted: cancelled exactly by the per-channel mean subtraction.
            mean = jnp.dot(acc, pmcol, preferred_element_type=jnp.float32)       # (Co, 1)
            cen = acc - mean
            var = jnp.dot(cen * cen, pmcol, preferred_element_type=jnp.float32)  # (Co, 1)
            y = cen * lax.rsqrt(var + eps)
            return jnp.where(y >= 0, y, neg_slope * y)                           # LeakyReLU

        for nb in range(Nb):                        # unrolled; samples are independent
            x_in = x_ref[nb]                        # (Cin, P), spatial on lanes
            x = x_in.astype(jnp.float32)

            # MaxPool2d(2,2): window max stored at the window's top-left lane.
            pooled = jnp.maximum(jnp.maximum(x, fetch(x, 1)),
                                 jnp.maximum(fetch(x, W), fetch(x, W + 1)))

            h1 = conv_in_lrelu(pooled, w1)          # (Co, P)
            h2 = conv_in_lrelu(h1, w2)              # (Co, P)

            # ConvTranspose2d(k=2, s=2): one matmul, then parity-interleaved combine.
            zu = jnp.dot(wu, h2, preferred_element_type=jnp.float32)   # (4*Cin, P)
            up = bu + par_m[0] * zu[0:Cin, :]
            for t in range(1, 4):
                dh, dw = t // 2, t % 2
                up = up + par_m[t] * fetch(zu[t * Cin:(t + 1) * Cin, :],
                                           -(dh * W + dw))

            # Fused skip concat + single full-tile store: out = [x ; center_crop(up) == up].
            o_ref[nb] = jnp.concatenate(
                [x_in.astype(out_dtype), up.astype(out_dtype)], axis=0)

    return kernel


# --------------------------- module forward pass ------------------------------

def unet_skip_block_innermost(x_nchw, params, batch_block=None):
    """Forward of UnetSkipConnectionBlock(innermost=True, drop_prob=0.0).

    x_nchw: (N, Cin, H, W) float32 (PyTorch NCHW convention).
    Returns (N, 2*Cin, H, W) == cat([x, center_crop(model(x))], dim=1).
    """
    N, Cin, H, W = x_nchw.shape
    assert H % 2 == 0 and W % 2 == 0, "pool/upconv round-trip assumes even spatial dims"
    Co = params["w1"].shape[0]
    assert Co == 2 * Cin, "innermost block wires conv2 output into ConvT(in*2, in)"
    P = H * W

    Nb = _choose_batch_block(N) if batch_block is None else batch_block
    assert N % Nb == 0
    G = N // Nb

    # Free (metadata-only) reshape: NCHW -> (N, C, H*W); spatial lands on the lane axis.
    x_flat = x_nchw.reshape(N, Cin, P)

    # Constant masks / stat column (baked at trace time; depend only on H, W).
    masks_np, pmcol_np = _build_masks(H, W)
    masks = jnp.asarray(masks_np)
    pmcol = jnp.asarray(pmcol_np)

    # One-time weight re-layout: tap-major stacked matrices for the single-dot convs.
    w1_s = jnp.transpose(params["w1"], (2, 3, 0, 1)).reshape(9 * Co, Cin)
    w2_s = jnp.transpose(params["w2"], (2, 3, 0, 1)).reshape(9 * Co, Co)
    wu_s = jnp.transpose(params["wu"], (2, 3, 1, 0)).reshape(4 * Cin, Co)
    bu = params["bu"].reshape(Cin, 1)
    # b1 / b2 intentionally not passed: per-channel conv bias is exactly cancelled by
    # InstanceNorm2d(affine=False)'s per-channel mean subtraction.

    kernel = _make_kernel(H, W, Cin, Co, Nb, x_nchw.dtype)

    out = pl.pallas_call(
        kernel,
        out_shape=jax.ShapeDtypeStruct((N, 2 * Cin, P), x_nchw.dtype),
        grid=(G,),
        in_specs=[
            pl.BlockSpec((Nb, Cin, P), lambda g: (g, 0, 0)),     # Nb samples / step
            pl.BlockSpec((12, P), lambda g: (0, 0)),             # masks (resident)
            pl.BlockSpec((P, 1), lambda g: (0, 0)),              # stat column (resident)
            pl.BlockSpec((9 * Co, Cin), lambda g: (0, 0)),       # conv1 stacked taps
            pl.BlockSpec((9 * Co, Co), lambda g: (0, 0)),        # conv2 stacked taps
            pl.BlockSpec((4 * Cin, Co), lambda g: (0, 0)),       # upconv stacked taps
            pl.BlockSpec((Cin, 1), lambda g: (0, 0)),            # upconv bias
        ],
        out_specs=pl.BlockSpec((Nb, 2 * Cin, P), lambda g: (g, 0, 0)),
        compiler_params=pltpu.CompilerParams(
            dimension_semantics=("parallel",),   # >=2 steps -> both TCs on v7x
        ),
    )(x_flat, masks, pmcol, w1_s, w2_s, wu_s, bu)

    # Free reshape back to NCHW (merged dims are adjacent and contiguous).
    return out.reshape(N, 2 * Cin, H, W)


# ------------------------------ plain-JAX reference ----------------------------

def _reference_forward(x, params):
    N, Cin, H, W = x.shape
    eps = 1e-5
    # MaxPool2d(2, 2)
    pooled = jnp.maximum(jnp.maximum(x[:, :, 0::2, 0::2], x[:, :, 0::2, 1::2]),
                         jnp.maximum(x[:, :, 1::2, 0::2], x[:, :, 1::2, 1::2]))

    def conv_in_lrelu(inp, w, b):
        y = lax.conv_general_dilated(
            inp, w, window_strides=(1, 1), padding=((1, 1), (1, 1)),
            dimension_numbers=("NCHW", "OIHW", "NCHW"),
            precision=lax.Precision.HIGHEST) + b[None, :, None, None]
        mean = jnp.mean(y, axis=(2, 3), keepdims=True)
        cen = y - mean
        var = jnp.mean(cen * cen, axis=(2, 3), keepdims=True)
        y = cen * lax.rsqrt(var + eps)
        return jnp.where(y >= 0, y, 0.01 * y)

    h1 = conv_in_lrelu(pooled, params["w1"], params["b1"])
    h2 = conv_in_lrelu(h1, params["w2"], params["b2"])
    # ConvTranspose2d(in*2, in, kernel_size=2, stride=2)
    up = jnp.einsum("nchw,cokl->nohkwl", h2, params["wu"],
                    precision=lax.Precision.HIGHEST)
    up = up.reshape(N, Cin, H, W) + params["bu"][None, :, None, None]
    return jnp.concatenate([x, up], axis=1)


def init_params(key, in_channels, out_channels):
    # Deterministic synthetic parameters (shapes match the module's __init__).
    assert out_channels == 2 * in_channels
    k1, k2, k3, k4, k5, k6 = jax.random.split(key, 6)
    return {
        "w1": 0.1 * jax.random.normal(k1, (out_channels, in_channels, 3, 3), jnp.float32),
        "b1": 0.1 * jax.random.normal(k2, (out_channels,), jnp.float32),   # cancelled by InstanceNorm
        "w2": 0.1 * jax.random.normal(k3, (out_channels, out_channels, 3, 3), jnp.float32),
        "b2": 0.1 * jax.random.normal(k4, (out_channels,), jnp.float32),   # cancelled by InstanceNorm
        "wu": 0.1 * jax.random.normal(k5, (in_channels * 2, in_channels, 2, 2), jnp.float32),
        "bu": 0.1 * jax.random.normal(k6, (in_channels,), jnp.float32),
    }


if __name__ == "__main__":
    key = jax.random.PRNGKey(0)
    kx, kp = jax.random.split(key)

    N, Cin, H, W = 2, 4, 16, 16
    Cout = 2 * Cin  # innermost UNet block convention

    x = jax.random.normal(kx, (N, Cin, H, W), jnp.float32)
    params = init_params(kp, Cin, Cout)

    fwd = jax.jit(unet_skip_block_innermost)
    out = jax.block_until_ready(fwd(x, params))

    assert out.shape == (N, 2 * Cin, H, W), out.shape
    assert bool(jnp.all(jnp.isfinite(out)))
    # The skip half of the concat must be the input, bit-exact.
    assert bool(jnp.all(out[:, :Cin] == x))
    # The compute half must match the plain-JAX reference.
    ref = jax.jit(_reference_forward)(x, params)
    max_err = jnp.max(jnp.abs(out - ref))
    assert bool(max_err < 2e-3), float(max_err)

    print("KERNEL_OK")
</pallas_src>

<mosaic_0001>
module attributes {stable_mosaic.version = 11 : i64} {
  func.func @kernel(%arg0: i32, %arg1: memref<1x4x256xf32, #tpu.memory_space<vmem>>, %arg2: memref<12x256xf32, #tpu.memory_space<vmem>>, %arg3: memref<256x1xf32, #tpu.memory_space<vmem>>, %arg4: memref<72x4xf32, #tpu.memory_space<vmem>>, %arg5: memref<72x8xf32, #tpu.memory_space<vmem>>, %arg6: memref<16x8xf32, #tpu.memory_space<vmem>>, %arg7: memref<4x1xf32, #tpu.memory_space<vmem>>, %arg8: memref<1x8x256xf32, #tpu.memory_space<vmem>>) attributes {dimension_semantics = [#tpu.dimension_semantics<parallel>], iteration_bounds = array<i64: 2>, scalar_prefetch = 0 : i64, scratch_operands = 0 : i64, tpu.core_type = #tpu.core_type<tc>, window_params = [{transform_indices = @transform_0, window_bounds = array<i64: 1, 4, 256>}, {pipeline_mode = #tpu.pipeline_mode<synchronous>, transform_indices = @transform_1, window_bounds = array<i64: 12, 256>}, {pipeline_mode = #tpu.pipeline_mode<synchronous>, transform_indices = @transform_2, window_bounds = array<i64: 256, 1>}, {pipeline_mode = #tpu.pipeline_mode<synchronous>, transform_indices = @transform_3, window_bounds = array<i64: 72, 4>}, {pipeline_mode = #tpu.pipeline_mode<synchronous>, transform_indices = @transform_4, window_bounds = array<i64: 72, 8>}, {pipeline_mode = #tpu.pipeline_mode<synchronous>, transform_indices = @transform_5, window_bounds = array<i64: 16, 8>}, {pipeline_mode = #tpu.pipeline_mode<synchronous>, transform_indices = @transform_6, window_bounds = array<i64: 4, 1>}, {transform_indices = @transform_7, window_bounds = array<i64: 1, 8, 256>}]} {
    %c0 = arith.constant 0 : index
    %c0_0 = arith.constant 0 : index
    %0 = vector.load %arg2[%c0, %c0_0] : memref<12x256xf32, #tpu.memory_space<vmem>>, vector<12x256xf32>
    %c0_1 = arith.constant 0 : index
    %c0_2 = arith.constant 0 : index
    %1 = vector.load %arg3[%c0_1, %c0_2] : memref<256x1xf32, #tpu.memory_space<vmem>>, vector<256x1xf32>
    %2 = vector.extract_strided_slice %0 {offsets = [0, 0], sizes = [1, 256], strides = [1, 1]} : vector<12x256xf32> to vector<1x256xf32>
    %3 = vector.extract_strided_slice %0 {offsets = [1, 0], sizes = [1, 256], strides = [1, 1]} : vector<12x256xf32> to vector<1x256xf32>
    %4 = vector.extract_strided_slice %0 {offsets = [2, 0], sizes = [1, 256], strides = [1, 1]} : vector<12x256xf32> to vector<1x256xf32>
    %5 = vector.extract_strided_slice %0 {offsets = [3, 0], sizes = [1, 256], strides = [1, 1]} : vector<12x256xf32> to vector<1x256xf32>
    %6 = vector.extract_strided_slice %0 {offsets = [4, 0], sizes = [1, 256], strides = [1, 1]} : vector<12x256xf32> to vector<1x256xf32>
    %7 = vector.extract_strided_slice %0 {offsets = [5, 0], sizes = [1, 256], strides = [1, 1]} : vector<12x256xf32> to vector<1x256xf32>
    %8 = vector.extract_strided_slice %0 {offsets = [6, 0], sizes = [1, 256], strides = [1, 1]} : vector<12x256xf32> to vector<1x256xf32>
    %9 = vector.extract_strided_slice %0 {offsets = [7, 0], sizes = [1, 256], strides = [1, 1]} : vector<12x256xf32> to vector<1x256xf32>
    %10 = vector.extract_strided_slice %0 {offsets = [8, 0], sizes = [1, 256], strides = [1, 1]} : vector<12x256xf32> to vector<1x256xf32>
    %11 = vector.extract_strided_slice %0 {offsets = [9, 0], sizes = [1, 256], strides = [1, 1]} : vector<12x256xf32> to vector<1x256xf32>
    %12 = vector.extract_strided_slice %0 {offsets = [10, 0], sizes = [1, 256], strides = [1, 1]} : vector<12x256xf32> to vector<1x256xf32>
    %13 = vector.extract_strided_slice %0 {offsets = [11, 0], sizes = [1, 256], strides = [1, 1]} : vector<12x256xf32> to vector<1x256xf32>
    %c0_3 = arith.constant 0 : index
    %c0_4 = arith.constant 0 : index
    %14 = vector.load %arg4[%c0_3, %c0_4] : memref<72x4xf32, #tpu.memory_space<vmem>>, vector<72x4xf32>
    %c0_5 = arith.constant 0 : index
    %c0_6 = arith.constant 0 : index
    %15 = vector.load %arg5[%c0_5, %c0_6] : memref<72x8xf32, #tpu.memory_space<vmem>>, vector<72x8xf32>
    %c0_7 = arith.constant 0 : index
    %c0_8 = arith.constant 0 : index
    %16 = vector.load %arg6[%c0_7, %c0_8] : memref<16x8xf32, #tpu.memory_space<vmem>>, vector<16x8xf32>
    %c0_9 = arith.constant 0 : index
    %c0_10 = arith.constant 0 : index
    %17 = vector.load %arg7[%c0_9, %c0_10] : memref<4x1xf32, #tpu.memory_space<vmem>>, vector<4x1xf32>
    %c0_11 = arith.constant 0 : index
    %c0_12 = arith.constant 0 : index
    %c0_13 = arith.constant 0 : index
    %18 = vector.load %arg1[%c0_11, %c0_12, %c0_13] : memref<1x4x256xf32, #tpu.memory_space<vmem>>, vector<1x4x256xf32>
    %19 = vector.shape_cast %18 : vector<1x4x256xf32> to vector<4x256xf32>
    %c255_i32 = arith.constant 255 : i32
    %20 = tpu.dynamic_rotate %19 by %c255_i32 dim 1 : vector<4x256xf32>, i32 -> vector<4x256xf32>
    %21 = arith.maximumf %19, %20 : vector<4x256xf32>
    %c240_i32 = arith.constant 240 : i32
    %22 = tpu.dynamic_rotate %19 by %c240_i32 dim 1 : vector<4x256xf32>, i32 -> vector<4x256xf32>
    %c239_i32 = arith.constant 239 : i32
    %23 = tpu.dynamic_rotate %19 by %c239_i32 dim 1 : vector<4x256xf32>, i32 -> vector<4x256xf32>
    %24 = arith.maximumf %22, %23 : vector<4x256xf32>
    %25 = arith.maximumf %21, %24 : vector<4x256xf32>
    %cst = arith.constant dense<0.000000e+00> : vector<72x256xf32>
    %26 = tpu.matmul %14, %25, %cst {dimension_numbers = #tpu.dot_dimension_numbers<[1], [0], [0], [1], [0, 0, 1, 1], [], []>} : vector<72x4xf32>, vector<4x256xf32>, vector<72x256xf32> -> vector<72x256xf32>
    %27 = vector.extract_strided_slice %26 {offsets = [32, 0], sizes = [8, 256], strides = [1, 1]} : vector<72x256xf32> to vector<8x256xf32>
    %28 = vector.extract_strided_slice %26 {offsets = [0, 0], sizes = [8, 256], strides = [1, 1]} : vector<72x256xf32> to vector<8x256xf32>
    %c34_i32 = arith.constant 34 : i32
    %29 = tpu.dynamic_rotate %28 by %c34_i32 dim 1 : vector<8x256xf32>, i32 -> vector<8x256xf32>
    %30 = vector.broadcast %3 : vector<1x256xf32> to vector<8x256xf32>
    %31 = arith.mulf %30, %29 : vector<8x256xf32>
    %32 = arith.addf %27, %31 : vector<8x256xf32>
    %33 = vector.extract_strided_slice %26 {offsets = [8, 0], sizes = [8, 256], strides = [1, 1]} : vector<72x256xf32> to vector<8x256xf32>
    %c32_i32 = arith.constant 32 : i32
    %34 = tpu.dynamic_rotate %33 by %c32_i32 dim 1 : vector<8x256xf32>, i32 -> vector<8x256xf32>
    %35 = vector.broadcast %4 : vector<1x256xf32> to vector<8x256xf32>
    %36 = arith.mulf %35, %34 : vector<8x256xf32>
    %37 = arith.addf %32, %36 : vector<8x256xf32>
    %38 = vector.extract_strided_slice %26 {offsets = [16, 0], sizes = [8, 256], strides = [1, 1]} : vector<72x256xf32> to vector<8x256xf32>
    %c30_i32 = arith.constant 30 : i32
    %39 = tpu.dynamic_rotate %38 by %c30_i32 dim 1 : vector<8x256xf32>, i32 -> vector<8x256xf32>
    %40 = vector.broadcast %5 : vector<1x256xf32> to vector<8x256xf32>
    %41 = arith.mulf %40, %39 : vector<8x256xf32>
    %42 = arith.addf %37, %41 : vector<8x256xf32>
    %43 = vector.extract_strided_slice %26 {offsets = [24, 0], sizes = [8, 256], strides = [1, 1]} : vector<72x256xf32> to vector<8x256xf32>
    %c2_i32 = arith.constant 2 : i32
    %44 = tpu.dynamic_rotate %43 by %c2_i32 dim 1 : vector<8x256xf32>, i32 -> vector<8x256xf32>
    %45 = vector.broadcast %6 : vector<1x256xf32> to vector<8x256xf32>
    %46 = arith.mulf %45, %44 : vector<8x256xf32>
    %47 = arith.addf %42, %46 : vector<8x256xf32>
    %48 = vector.extract_strided_slice %26 {offsets = [40, 0], sizes = [8, 256], strides = [1, 1]} : vector<72x256xf32> to vector<8x256xf32>
    %c254_i32 = arith.constant 254 : i32
    %49 = tpu.dynamic_rotate %48 by %c254_i32 dim 1 : vector<8x256xf32>, i32 -> vector<8x256xf32>
    %50 = vector.broadcast %7 : vector<1x256xf32> to vector<8x256xf32>
    %51 = arith.mulf %50, %49 : vector<8x256xf32>
    %52 = arith.addf %47, %51 : vector<8x256xf32>
    %53 = vector.extract_strided_slice %26 {offsets = [48, 0], sizes = [8, 256], strides = [1, 1]} : vector<72x256xf32> to vector<8x256xf32>
    %c226_i32 = arith.constant 226 : i32
    %54 = tpu.dynamic_rotate %53 by %c226_i32 dim 1 : vector<8x256xf32>, i32 -> vector<8x256xf32>
    %55 = vector.broadcast %8 : vector<1x256xf32> to vector<8x256xf32>
    %56 = arith.mulf %55, %54 : vector<8x256xf32>
    %57 = arith.addf %52, %56 : vector<8x256xf32>
    %58 = vector.extract_strided_slice %26 {offsets = [56, 0], sizes = [8, 256], strides = [1, 1]} : vector<72x256xf32> to vector<8x256xf32>
    %c224_i32 = arith.constant 224 : i32
    %59 = tpu.dynamic_rotate %58 by %c224_i32 dim 1 : vector<8x256xf32>, i32 -> vector<8x256xf32>
    %60 = vector.broadcast %9 : vector<1x256xf32> to vector<8x256xf32>
    %61 = arith.mulf %60, %59 : vector<8x256xf32>
    %62 = arith.addf %57, %61 : vector<8x256xf32>
    %63 = vector.extract_strided_slice %26 {offsets = [64, 0], sizes = [8, 256], strides = [1, 1]} : vector<72x256xf32> to vector<8x256xf32>
    %c222_i32 = arith.constant 222 : i32
    %64 = tpu.dynamic_rotate %63 by %c222_i32 dim 1 : vector<8x256xf32>, i32 -> vector<8x256xf32>
    %65 = vector.broadcast %10 : vector<1x256xf32> to vector<8x256xf32>
    %66 = arith.mulf %65, %64 : vector<8x256xf32>
    %67 = arith.addf %62, %66 : vector<8x256xf32>
    %cst_14 = arith.constant dense<0.000000e+00> : vector<8x1xf32>
    %68 = tpu.matmul %67, %1, %cst_14 {dimension_numbers = #tpu.dot_dimension_numbers<[1], [0], [0], [1], [0, 0, 1, 1], [], []>} : vector<8x256xf32>, vector<256x1xf32>, vector<8x1xf32> -> vector<8x1xf32>
    %69 = vector.broadcast %68 : vector<8x1xf32> to vector<8x256xf32>
    %70 = arith.subf %67, %69 : vector<8x256xf32>
    %71 = arith.mulf %70, %70 : vector<8x256xf32>
    %cst_15 = arith.constant dense<0.000000e+00> : vector<8x1xf32>
    %72 = tpu.matmul %71, %1, %cst_15 {dimension_numbers = #tpu.dot_dimension_numbers<[1], [0], [0], [1], [0, 0, 1, 1], [], []>} : vector<8x256xf32>, vector<256x1xf32>, vector<8x1xf32> -> vector<8x1xf32>
    %cst_16 = arith.constant 9.99999974E-6 : f32
    %73 = vector.broadcast %cst_16 : f32 to vector<8x1xf32>
    %74 = arith.addf %72, %73 : vector<8x1xf32>
    %75 = math.rsqrt %74 : vector<8x1xf32>
    %76 = vector.broadcast %75 : vector<8x1xf32> to vector<8x256xf32>
    %77 = arith.mulf %70, %76 : vector<8x256xf32>
    %cst_17 = arith.constant 0.000000e+00 : f32
    %78 = vector.broadcast %cst_17 : f32 to vector<8x256xf32>
    %79 = arith.cmpf oge, %77, %78 : vector<8x256xf32>
    %cst_18 = arith.constant 0.00999999977 : f32
    %80 = vector.broadcast %cst_18 : f32 to vector<8x256xf32>
    %81 = arith.mulf %80, %77 : vector<8x256xf32>
    %82 = arith.select %79, %77, %81 : vector<8x256xi1>, vector<8x256xf32>
    %cst_19 = arith.constant dense<0.000000e+00> : vector<72x256xf32>
    %83 = tpu.matmul %15, %82, %cst_19 {dimension_numbers = #tpu.dot_dimension_numbers<[1], [0], [0], [1], [0, 0, 1, 1], [], []>} : vector<72x8xf32>, vector<8x256xf32>, vector<72x256xf32> -> vector<72x256xf32>
    %84 = vector.extract_strided_slice %83 {offsets = [32, 0], sizes = [8, 256], strides = [1, 1]} : vector<72x256xf32> to vector<8x256xf32>
    %85 = vector.extract_strided_slice %83 {offsets = [0, 0], sizes = [8, 256], strides = [1, 1]} : vector<72x256xf32> to vector<8x256xf32>
    %c34_i32_20 = arith.constant 34 : i32
    %86 = tpu.dynamic_rotate %85 by %c34_i32_20 dim 1 : vector<8x256xf32>, i32 -> vector<8x256xf32>
    %87 = vector.broadcast %3 : vector<1x256xf32> to vector<8x256xf32>
    %88 = arith.mulf %87, %86 : vector<8x256xf32>
    %89 = arith.addf %84, %88 : vector<8x256xf32>
    %90 = vector.extract_strided_slice %83 {offsets = [8, 0], sizes = [8, 256], strides = [1, 1]} : vector<72x256xf32> to vector<8x256xf32>
    %c32_i32_21 = arith.constant 32 : i32
    %91 = tpu.dynamic_rotate %90 by %c32_i32_21 dim 1 : vector<8x256xf32>, i32 -> vector<8x256xf32>
    %92 = vector.broadcast %4 : vector<1x256xf32> to vector<8x256xf32>
    %93 = arith.mulf %92, %91 : vector<8x256xf32>
    %94 = arith.addf %89, %93 : vector<8x256xf32>
    %95 = vector.extract_strided_slice %83 {offsets = [16, 0], sizes = [8, 256], strides = [1, 1]} : vector<72x256xf32> to vector<8x256xf32>
    %c30_i32_22 = arith.constant 30 : i32
    %96 = tpu.dynamic_rotate %95 by %c30_i32_22 dim 1 : vector<8x256xf32>, i32 -> vector<8x256xf32>
    %97 = vector.broadcast %5 : vector<1x256xf32> to vector<8x256xf32>
    %98 = arith.mulf %97, %96 : vector<8x256xf32>
    %99 = arith.addf %94, %98 : vector<8x256xf32>
    %100 = vector.extract_strided_slice %83 {offsets = [24, 0], sizes = [8, 256], strides = [1, 1]} : vector<72x256xf32> to vector<8x256xf32>
    %c2_i32_23 = arith.constant 2 : i32
    %101 = tpu.dynamic_rotate %100 by %c2_i32_23 dim 1 : vector<8x256xf32>, i32 -> vector<8x256xf32>
    %102 = vector.broadcast %6 : vector<1x256xf32> to vector<8x256xf32>
    %103 = arith.mulf %102, %101 : vector<8x256xf32>
    %104 = arith.addf %99, %103 : vector<8x256xf32>
    %105 = vector.extract_strided_slice %83 {offsets = [40, 0], sizes = [8, 256], strides = [1, 1]} : vector<72x256xf32> to vector<8x256xf32>
    %c254_i32_24 = arith.constant 254 : i32
    %106 = tpu.dynamic_rotate %105 by %c254_i32_24 dim 1 : vector<8x256xf32>, i32 -> vector<8x256xf32>
    %107 = vector.broadcast %7 : vector<1x256xf32> to vector<8x256xf32>
    %108 = arith.mulf %107, %106 : vector<8x256xf32>
    %109 = arith.addf %104, %108 : vector<8x256xf32>
    %110 = vector.extract_strided_slice %83 {offsets = [48, 0], sizes = [8, 256], strides = [1, 1]} : vector<72x256xf32> to vector<8x256xf32>
    %c226_i32_25 = arith.constant 226 : i32
    %111 = tpu.dynamic_rotate %110 by %c226_i32_25 dim 1 : vector<8x256xf32>, i32 -> vector<8x256xf32>
    %112 = vector.broadcast %8 : vector<1x256xf32> to vector<8x256xf32>
    %113 = arith.mulf %112, %111 : vector<8x256xf32>
    %114 = arith.addf %109, %113 : vector<8x256xf32>
    %115 = vector.extract_strided_slice %83 {offsets = [56, 0], sizes = [8, 256], strides = [1, 1]} : vector<72x256xf32> to vector<8x256xf32>
    %c224_i32_26 = arith.constant 224 : i32
    %116 = tpu.dynamic_rotate %115 by %c224_i32_26 dim 1 : vector<8x256xf32>, i32 -> vector<8x256xf32>
    %117 = vector.broadcast %9 : vector<1x256xf32> to vector<8x256xf32>
    %118 = arith.mulf %117, %116 : vector<8x256xf32>
    %119 = arith.addf %114, %118 : vector<8x256xf32>
    %120 = vector.extract_strided_slice %83 {offsets = [64, 0], sizes = [8, 256], strides = [1, 1]} : vector<72x256xf32> to vector<8x256xf32>
    %c222_i32_27 = arith.constant 222 : i32
    %121 = tpu.dynamic_rotate %120 by %c222_i32_27 dim 1 : vector<8x256xf32>, i32 -> vector<8x256xf32>
    %122 = vector.broadcast %10 : vector<1x256xf32> to vector<8x256xf32>
    %123 = arith.mulf %122, %121 : vector<8x256xf32>
    %124 = arith.addf %119, %123 : vector<8x256xf32>
    %cst_28 = arith.constant dense<0.000000e+00> : vector<8x1xf32>
    %125 = tpu.matmul %124, %1, %cst_28 {dimension_numbers = #tpu.dot_dimension_numbers<[1], [0], [0], [1], [0, 0, 1, 1], [], []>} : vector<8x256xf32>, vector<256x1xf32>, vector<8x1xf32> -> vector<8x1xf32>
    %126 = vector.broadcast %125 : vector<8x1xf32> to vector<8x256xf32>
    %127 = arith.subf %124, %126 : vector<8x256xf32>
    %128 = arith.mulf %127, %127 : vector<8x256xf32>
    %cst_29 = arith.constant dense<0.000000e+00> : vector<8x1xf32>
    %129 = tpu.matmul %128, %1, %cst_29 {dimension_numbers = #tpu.dot_dimension_numbers<[1], [0], [0], [1], [0, 0, 1, 1], [], []>} : vector<8x256xf32>, vector<256x1xf32>, vector<8x1xf32> -> vector<8x1xf32>
    %cst_30 = arith.constant 9.99999974E-6 : f32
    %130 = vector.broadcast %cst_30 : f32 to vector<8x1xf32>
    %131 = arith.addf %129, %130 : vector<8x1xf32>
    %132 = math.rsqrt %131 : vector<8x1xf32>
    %133 = vector.broadcast %132 : vector<8x1xf32> to vector<8x256xf32>
    %134 = arith.mulf %127, %133 : vector<8x256xf32>
    %cst_31 = arith.constant 0.000000e+00 : f32
    %135 = vector.broadcast %cst_31 : f32 to vector<8x256xf32>
    %136 = arith.cmpf oge, %134, %135 : vector<8x256xf32>
    %cst_32 = arith.constant 0.00999999977 : f32
    %137 = vector.broadcast %cst_32 : f32 to vector<8x256xf32>
    %138 = arith.mulf %137, %134 : vector<8x256xf32>
    %139 = arith.select %136, %134, %138 : vector<8x256xi1>, vector<8x256xf32>
    %cst_33 = arith.constant dense<0.000000e+00> : vector<16x256xf32>
    %140 = tpu.matmul %16, %139, %cst_33 {dimension_numbers = #tpu.dot_dimension_numbers<[1], [0], [0], [1], [0, 0, 1, 1], [], []>} : vector<16x8xf32>, vector<8x256xf32>, vector<16x256xf32> -> vector<16x256xf32>
    %141 = vector.extract_strided_slice %140 {offsets = [0, 0], sizes = [4, 256], strides = [1, 1]} : vector<16x256xf32> to vector<4x256xf32>
    %142 = vector.broadcast %2 : vector<1x256xf32> to vector<4x256xf32>
    %143 = arith.mulf %142, %141 : vector<4x256xf32>
    %144 = vector.broadcast %17 : vector<4x1xf32> to vector<4x256xf32>
    %145 = arith.addf %144, %143 : vector<4x256xf32>
    %146 = vector.extract_strided_slice %140 {offsets = [4, 0], sizes = [4, 256], strides = [1, 1]} : vector<16x256xf32> to vector<4x256xf32>
    %c1_i32 = arith.constant 1 : i32
    %147 = tpu.dynamic_rotate %146 by %c1_i32 dim 1 : vector<4x256xf32>, i32 -> vector<4x256xf32>
    %148 = vector.broadcast %11 : vector<1x256xf32> to vector<4x256xf32>
    %149 = arith.mulf %148, %147 : vector<4x256xf32>
    %150 = arith.addf %145, %149 : vector<4x256xf32>
    %151 = vector.extract_strided_slice %140 {offsets = [8, 0], sizes = [4, 256], strides = [1, 1]} : vector<16x256xf32> to vector<4x256xf32>
    %c16_i32 = arith.constant 16 : i32
    %152 = tpu.dynamic_rotate %151 by %c16_i32 dim 1 : vector<4x256xf32>, i32 -> vector<4x256xf32>
    %153 = vector.broadcast %12 : vector<1x256xf32> to vector<4x256xf32>
    %154 = arith.mulf %153, %152 : vector<4x256xf32>
    %155 = arith.addf %150, %154 : vector<4x256xf32>
    %156 = vector.extract_strided_slice %140 {offsets = [12, 0], sizes = [4, 256], strides = [1, 1]} : vector<16x256xf32> to vector<4x256xf32>
    %c17_i32 = arith.constant 17 : i32
    %157 = tpu.dynamic_rotate %156 by %c17_i32 dim 1 : vector<4x256xf32>, i32 -> vector<4x256xf32>
    %158 = vector.broadcast %13 : vector<1x256xf32> to vector<4x256xf32>
    %159 = arith.mulf %158, %157 : vector<4x256xf32>
    %160 = arith.addf %155, %159 : vector<4x256xf32>
    %161 = tpu.concatenate %19, %160 in 0 : vector<4x256xf32>, vector<4x256xf32> -> vector<8x256xf32>
    %c0_34 = arith.constant 0 : index
    %c0_35 = arith.constant 0 : index
    %c0_36 = arith.constant 0 : index
    %162 = vector.load %arg8[%c0_34, %c0_35, %c0_36] : memref<1x8x256xf32, #tpu.memory_space<vmem>>, vector<1x8x256xf32>
    %163 = vector.shape_cast %162 : vector<1x8x256xf32> to vector<8x256xf32>
    %164 = vector.shape_cast %161 : vector<8x256xf32> to vector<1x8x256xf32>
    tpu.vector_store %arg8[%c0_34, %c0_35, %c0_36], %164 {strides = array<i32>} : memref<1x8x256xf32, #tpu.memory_space<vmem>>, vector<1x8x256xf32>,
    return
  }
  func.func @transform_0(%arg0: i32) -> (i32, i32, i32) {
    %c0_i32 = arith.constant 0 : i32
    %c0_i32_0 = arith.constant 0 : i32
    %c0_i32_1 = arith.constant 0 : i32
    return %arg0, %c0_i32, %c0_i32_0 : i32, i32, i32
  }
  func.func @transform_1(%arg0: i32) -> (i32, i32) {
    %c0_i32 = arith.constant 0 : i32
    %c0_i32_0 = arith.constant 0 : i32
    %c0_i32_1 = arith.constant 0 : i32
    return %c0_i32, %c0_i32_0 : i32, i32
  }
  func.func @transform_2(%arg0: i32) -> (i32, i32) {
    %c0_i32 = arith.constant 0 : i32
    %c0_i32_0 = arith.constant 0 : i32
    %c0_i32_1 = arith.constant 0 : i32
    return %c0_i32, %c0_i32_0 : i32, i32
  }
  func.func @transform_3(%arg0: i32) -> (i32, i32) {
    %c0_i32 = arith.constant 0 : i32
    %c0_i32_0 = arith.constant 0 : i32
    %c0_i32_1 = arith.constant 0 : i32
    return %c0_i32, %c0_i32_0 : i32, i32
  }
  func.func @transform_4(%arg0: i32) -> (i32, i32) {
    %c0_i32 = arith.constant 0 : i32
    %c0_i32_0 = arith.constant 0 : i32
    %c0_i32_1 = arith.constant 0 : i32
    return %c0_i32, %c0_i32_0 : i32, i32
  }
  func.func @transform_5(%arg0: i32) -> (i32, i32) {
    %c0_i32 = arith.constant 0 : i32
    %c0_i32_0 = arith.constant 0 : i32
    %c0_i32_1 = arith.constant 0 : i32
    return %c0_i32, %c0_i32_0 : i32, i32
  }
  func.func @transform_6(%arg0: i32) -> (i32, i32) {
    %c0_i32 = arith.constant 0 : i32
    %c0_i32_0 = arith.constant 0 : i32
    %c0_i32_1 = arith.constant 0 : i32
    return %c0_i32, %c0_i32_0 : i32, i32
  }
  func.func @transform_7(%arg0: i32) -> (i32, i32, i32) {
    %c0_i32 = arith.constant 0 : i32
    %c0_i32_0 = arith.constant 0 : i32
    %c0_i32_1 = arith.constant 0 : i32
    return %arg0, %c0_i32, %c0_i32_0 : i32, i32, i32
  }
}

</mosaic_0001>

<llo_original>
// kernel: unet_skip_block_innermost.1
$region0: #{unet_skip_block_innermost.1}
  #allocation0 [shape = 'u32[]', space=smem, size = 0x4, offset = 0x4, fixed_abs, tag = 'smem constant byte address 0x4 - core index']
  #allocation1 [shape = 'u32[144,128]{1,0:T(1,128)}', space=vmem, size = 0x12000, scoped, tag = 'internal scratch']
  %s0 = inlined_call_operand.vmem [shape: f32[2,4,256], index: 0, kind: input, shape index: {}]
  %s1 = inlined_call_operand.hbm [shape: f32[12,256], index: 1, kind: input, shape index: {}]
  %s2 = inlined_call_operand.vmem [shape: f32[256,1], index: 2, kind: input, shape index: {}]
  %s3 = inlined_call_operand.vmem [shape: f32[72,4], index: 3, kind: input, shape index: {}]
  %s4 = inlined_call_operand.vmem [shape: f32[72,8], index: 4, kind: input, shape index: {}]
  %s5 = inlined_call_operand.vmem [shape: f32[16,8], index: 5, kind: input, shape index: {}]
  %s6 = inlined_call_operand.vmem [shape: f32[4,1], index: 6, kind: input, shape index: {}]
  %s7 = inlined_call_operand.vmem [shape: f32[2,8,256], index: 7, kind: output, shape index: {}]
  %s8 = sld [smem:[#allocation0]]
  $region65: #{unet_skip_block_innermost.1} parent=0
    _
  %s10 = ssub.s32 1, %s8
  %s11 = scalar_select 0, %s10, %s8
  $region1: #{unet_skip_block_innermost.1} parent=0
    #allocation2 [shape = 'u8[16384]{0}', space=vmem, size = 0x4000, scoped, tag = 'input window, operand 1, single buffered']
    #allocation3 [shape = 's32[2]{0}', space=sflag, size = 0x8, scoped, tag = 'scoped memory for unet_skip_block_innermost.1']
    %12 = vsyncpa [#allocation3], 0
    loop: start=0, step=1, limit=4
    $region2: #{unet_skip_block_innermost.1} parent=1 // loop_pre_header
      _
    $region3: #{unet_skip_block_innermost.1} parent=1 // loop_header
      %s14 = sphi 0, %s18
      %p15 = scmp.ge.s32.totalorder %s14, 4
      %s24 = sphi 0, %s26
      %s27 = sphi 0, %s24
      %s28 = sphi 0, %s27
      %s44 = sphi 0, %s28
      %s48 = sphi 0, %s48
      %s50 = sphi 0, %s48
      %s51 = sphi 0, %s50
      %s65 = sphi 0, %s51
      %s69 = sphi 0, %s69
      %s71 = sphi 0, %s69
      %s72 = sphi 0, %s71
      %s86 = sphi 0, %s72
      %s90 = sphi 0, %s90
      %s92 = sphi 0, %s90
      %s93 = sphi 0, %s92
      %s107 = sphi 0, %s93
      %s111 = sphi 0, %s111
      %s113 = sphi 0, %s111
      %s114 = sphi 0, %s113
      %s128 = sphi 0, %s114
      %s132 = sphi 0, %s132
      %s134 = sphi 0, %s132
      %s135 = sphi 0, %s134
      %s149 = sphi 0, %s135
      %s153 = sphi 0, %s153
      %s155 = sphi 0, %s153
      %s156 = sphi 0, %s155
      %s170 = sphi 0, %s156
      %s176 = sphi 0, %s178
      %s179 = sphi 0, %s176
      %s180 = sphi 0, %s179
      %s196 = sphi 0, %s180
    $region4: #{unet_skip_block_innermost.1} parent=1 // loop_header_branch
      %17 = sbr.rel (%p15) target = $region8
    $region5: #{unet_skip_block_innermost.1} parent=1 // loop_body
      %s19 = ssub.s32 %s14, 1
      %s20 = ssub.s32 %s14, 2
      %s21 = sadd.s32 %s14, 1
      %s22 = ssub.s32 %s14, %s21
      %p23 = scmp.eq.s32.totalorder %s22, 0
      %s25 = sadd.s32 %s24, 1
      %s26 = scalar_select %p23, %s24, %s25
      %p29 = pneg %p23
      %p30 = scmp.eq.s32.totalorder %s14, 1
      %p31 = por %p29, %p30
      %p32 = scmp.ne.s32.totalorder %s24, %s27
      %p33 = scmp.eq.s32.totalorder %s14, 0
      %p34 = por %p32, %p33
      %p35 = scmp.ne.s32.totalorder %s24, %s27
      %p36 = scmp.eq.s32.totalorder %s19, 1
      %p37 = por %p35, %p36
      %p38 = scmp.ne.s32.totalorder %s27, %s28
      %p39 = scmp.eq.s32.totalorder %s19, 0
      %p40 = por %p38, %p39
      %p41 = scmp.ne.s32.totalorder %s27, %s28
      %p42 = scmp.eq.s32.totalorder %s20, 1
      %p43 = por %p41, %p42
      %p45 = scmp.ne.s32.totalorder %s28, %s44
      %p46 = scmp.eq.s32.totalorder %s20, 0
      %p47 = por %p45, %p46
      %s49 = sadd.s32 %s48, 1
      %p52 = scmp.eq.s32.totalorder %s14, 1
      %p53 = scmp.ne.s32.totalorder %s48, %s50
      %p54 = scmp.eq.s32.totalorder %s14, 0
      %p55 = por %p53, %p54
      %p56 = scmp.ne.s32.totalorder %s48, %s50
      %p57 = scmp.eq.s32.totalorder %s19, 1
      %p58 = por %p56, %p57
      %p59 = scmp.ne.s32.totalorder %s50, %s51
      %p60 = scmp.eq.s32.totalorder %s19, 0
      %p61 = por %p59, %p60
      %p62 = scmp.ne.s32.totalorder %s50, %s51
      %p63 = scmp.eq.s32.totalorder %s20, 1
      %p64 = por %p62, %p63
      %p66 = scmp.ne.s32.totalorder %s51, %s65
      %p67 = scmp.eq.s32.totalorder %s20, 0
      %p68 = por %p66, %p67
      %s70 = sadd.s32 %s69, 1
      %p73 = scmp.eq.s32.totalorder %s14, 1
      %p74 = scmp.ne.s32.totalorder %s69, %s71
      %p75 = scmp.eq.s32.totalorder %s14, 0
      %p76 = por %p74, %p75
      %p77 = scmp.ne.s32.totalorder %s69, %s71
      %p78 = scmp.eq.s32.totalorder %s19, 1
      %p79 = por %p77, %p78
      %p80 = scmp.ne.s32.totalorder %s71, %s72
      %p81 = scmp.eq.s32.totalorder %s19, 0
      %p82 = por %p80, %p81
      %p83 = scmp.ne.s32.totalorder %s71, %s72
      %p84 = scmp.eq.s32.totalorder %s20, 1
      %p85 = por %p83, %p84
      %p87 = scmp.ne.s32.totalorder %s72, %s86
      %p88 = scmp.eq.s32.totalorder %s20, 0
      %p89 = por %p87, %p88
      %s91 = sadd.s32 %s90, 1
      %p94 = scmp.eq.s32.totalorder %s14, 1
      %p95 = scmp.ne.s32.totalorder %s90, %s92
      %p96 = scmp.eq.s32.totalorder %s14, 0
      %p97 = por %p95, %p96
      %p98 = scmp.ne.s32.totalorder %s90, %s92
      %p99 = scmp.eq.s32.totalorder %s19, 1
      %p100 = por %p98, %p99
      %p101 = scmp.ne.s32.totalorder %s92, %s93
      %p102 = scmp.eq.s32.totalorder %s19, 0
      %p103 = por %p101, %p102
      %p104 = scmp.ne.s32.totalorder %s92, %s93
      %p105 = scmp.eq.s32.totalorder %s20, 1
      %p106 = por %p104, %p105
      %p108 = scmp.ne.s32.totalorder %s93, %s107
      %p109 = scmp.eq.s32.totalorder %s20, 0
      %p110 = por %p108, %p109
      %s112 = sadd.s32 %s111, 1
      %p115 = scmp.eq.s32.totalorder %s14, 1
      %p116 = scmp.ne.s32.totalorder %s111, %s113
      %p117 = scmp.eq.s32.totalorder %s14, 0
      %p118 = por %p116, %p117
      %p119 = scmp.ne.s32.totalorder %s111, %s113
      %p120 = scmp.eq.s32.totalorder %s19, 1
      %p121 = por %p119, %p120
      %p122 = scmp.ne.s32.totalorder %s113, %s114
      %p123 = scmp.eq.s32.totalorder %s19, 0
      %p124 = por %p122, %p123
      %p125 = scmp.ne.s32.totalorder %s113, %s114
      %p126 = scmp.eq.s32.totalorder %s20, 1
      %p127 = por %p125, %p126
      %p129 = scmp.ne.s32.totalorder %s114, %s128
      %p130 = scmp.eq.s32.totalorder %s20, 0
      %p131 = por %p129, %p130
      %s133 = sadd.s32 %s132, 1
      %p136 = scmp.eq.s32.totalorder %s14, 1
      %p137 = scmp.ne.s32.totalorder %s132, %s134
      %p138 = scmp.eq.s32.totalorder %s14, 0
      %p139 = por %p137, %p138
      %p140 = scmp.ne.s32.totalorder %s132, %s134
      %p141 = scmp.eq.s32.totalorder %s19, 1
      %p142 = por %p140, %p141
      %p143 = scmp.ne.s32.totalorder %s134, %s135
      %p144 = scmp.eq.s32.totalorder %s19, 0
      %p145 = por %p143, %p144
      %p146 = scmp.ne.s32.totalorder %s134, %s135
      %p147 = scmp.eq.s32.totalorder %s20, 1
      %p148 = por %p146, %p147
      %p150 = scmp.ne.s32.totalorder %s135, %s149
      %p151 = scmp.eq.s32.totalorder %s20, 0
      %p152 = por %p150, %p151
      %s154 = sadd.s32 %s153, 1
      %p157 = scmp.eq.s32.totalorder %s14, 1
      %p158 = scmp.ne.s32.totalorder %s153, %s155
      %p159 = scmp.eq.s32.totalorder %s14, 0
      %p160 = por %p158, %p159
      %p161 = scmp.ne.s32.totalorder %s153, %s155
      %p162 = scmp.eq.s32.totalorder %s19, 1
      %p163 = por %p161, %p162
      %p164 = scmp.ne.s32.totalorder %s155, %s156
      %p165 = scmp.eq.s32.totalorder %s19, 0
      %p166 = por %p164, %p165
      %p167 = scmp.ne.s32.totalorder %s155, %s156
      %p168 = scmp.eq.s32.totalorder %s20, 1
      %p169 = por %p167, %p168
      %p171 = scmp.ne.s32.totalorder %s156, %s170
      %p172 = scmp.eq.s32.totalorder %s20, 0
      %p173 = por %p171, %p172
      %s174 = ssub.s32 %s14, %s21
      %p175 = scmp.eq.s32.totalorder %s174, 0
      %s177 = sadd.s32 %s176, 1
      %s178 = scalar_select %p175, %s176, %s177
      %p181 = pneg %p175
      %p182 = scmp.eq.s32.totalorder %s14, 1
      %p183 = por %p181, %p182
      %p184 = scmp.ne.s32.totalorder %s176, %s179
      %p185 = scmp.eq.s32.totalorder %s14, 0
      %p186 = por %p184, %p185
      %p187 = scmp.ne.s32.totalorder %s176, %s179
      %p188 = scmp.eq.s32.totalorder %s19, 1
      %p189 = por %p187, %p188
      %p190 = scmp.ne.s32.totalorder %s179, %s180
      %p191 = scmp.eq.s32.totalorder %s19, 0
      %p192 = por %p190, %p191
      %p193 = scmp.ne.s32.totalorder %s179, %s180
      %p194 = scmp.eq.s32.totalorder %s20, 1
      %p195 = por %p193, %p194
      %p197 = scmp.ne.s32.totalorder %s180, %s196
      %p198 = scmp.eq.s32.totalorder %s20, 0
      %p199 = por %p197, %p198
      %p200 = scmp.le.s32.totalorder 1, %s14
      %p201 = scmp.lt.s32.totalorder %s14, 3
      %p202 = pnand %p200, %p201
      %p203 = pneg %p202
      // Predicated region
      $region9: #{unet_skip_block_innermost.1} parent=5 // pred_check
        _
      $region10: #{unet_skip_block_innermost.1} parent=5 // pred_check_branch
        %205 = sbr.rel (%p202) target = $region12
      $region11: #{unet_skip_block_innermost.1} parent=5 // pred_region
        %s206 = ssub.s32 %s14, 1
        // Predicated region
        $region13: #{unet_skip_block_innermost.1} parent=11 // pred_check
          %p207 = pneg %p61
        $region14: #{unet_skip_block_innermost.1} parent=11 // pred_check_branch
          %209 = sbr.rel (%p207) target = $region16
        $region15: #{unet_skip_block_innermost.1} parent=11 // pred_region
          %s211 = ssub.s32 512, 512
          %212 = vsyncadd [#allocation3], %s211
          %s213 = sshll.u32 [#allocation2], 4
          %s214 = int_to_ptr.vmem [resolvable:$true] %s213
          %219 = dma.hbm_to_vmem [thread:$0]  %s1, 512, %s214, [#allocation3], 256, 256, 16
        $region16: #{unet_skip_block_innermost.1} parent=11 // pred_fallthru
          _
        // Predicated region
        $region17: #{unet_skip_block_innermost.1} parent=11 // pred_check
          %p220 = pneg %p82
        $region18: #{unet_skip_block_innermost.1} parent=11 // pred_check_branch
          %222 = sbr.rel (%p220) target = $region20
        $region19: #{unet_skip_block_innermost.1} parent=11 // pred_region
          _
        $region20: #{unet_skip_block_innermost.1} parent=11 // pred_fallthru
          _
        // Predicated region
        $region21: #{unet_skip_block_innermost.1} parent=11 // pred_check
          %p223 = pneg %p103
        $region22: #{unet_skip_block_innermost.1} parent=11 // pred_check_branch
          %225 = sbr.rel (%p223) target = $region24
        $region23: #{unet_skip_block_innermost.1} parent=11 // pred_region
          _
        $region24: #{unet_skip_block_innermost.1} parent=11 // pred_fallthru
          _
        // Predicated region
        $region25: #{unet_skip_block_innermost.1} parent=11 // pred_check
          %p226 = pneg %p124
        $region26: #{unet_skip_block_innermost.1} parent=11 // pred_check_branch
          %228 = sbr.rel (%p226) target = $region28
        $region27: #{unet_skip_block_innermost.1} parent=11 // pred_region
          _
        $region28: #{unet_skip_block_innermost.1} parent=11 // pred_fallthru
          _
        // Predicated region
        $region29: #{unet_skip_block_innermost.1} parent=11 // pred_check
          %p229 = pneg %p145
        $region30: #{unet_skip_block_innermost.1} parent=11 // pred_check_branch
          %231 = sbr.rel (%p229) target = $region32
        $region31: #{unet_skip_block_innermost.1} parent=11 // pred_region
          _
        $region32: #{unet_skip_block_innermost.1} parent=11 // pred_fallthru
          _
        // Predicated region
        $region33: #{unet_skip_block_innermost.1} parent=11 // pred_check
          %p232 = pneg %p166
        $region34: #{unet_skip_block_innermost.1} parent=11 // pred_check_branch
          %234 = sbr.rel (%p232) target = $region36
        $region35: #{unet_skip_block_innermost.1} parent=11 // pred_region
          _
        $region36: #{unet_skip_block_innermost.1} parent=11 // pred_fallthru
          _
      $region12: #{unet_skip_block_innermost.1} parent=5 // pred_fallthru
        _
      %p235 = scmp.lt.s32.totalorder %s14, 2
      // Predicated region
      $region37: #{unet_skip_block_innermost.1} parent=5 // pred_check
        %p236 = pneg %p235
      $region38: #{unet_skip_block_innermost.1} parent=5 // pred_check_branch
        %238 = sbr.rel (%p236) target = $region40
      $region39: #{unet_skip_block_innermost.1} parent=5 // pred_region
        // Predicated region
        $region41: #{unet_skip_block_innermost.1} parent=39 // pred_check
          %p239 = pneg %p34
        $region42: #{unet_skip_block_innermost.1} parent=39 // pred_check_branch
          %241 = sbr.rel (%p239) target = $region44
        $region43: #{unet_skip_block_innermost.1} parent=39 // pred_region
          %p242 = scmp.lt.s32.totalorder %s14, 1
          %s243 = scalar_select %p242, %s14, 1
          %s244 = smul.addr %s243, 2
          %s245 = smul.addr %s244, 4
          %s246 = scalar_lea.vmem %s0, %s245
        $region44: #{unet_skip_block_innermost.1} parent=39 // pred_fallthru
          _
      $region40: #{unet_skip_block_innermost.1} parent=5 // pred_fallthru
        _
      %p247 = scmp.le.s32.totalorder 1, %s14
      %p248 = scmp.lt.s32.totalorder %s14, 3
      %p249 = pnand %p247, %p248
      %p250 = pneg %p249
      // Predicated region
      $region45: #{unet_skip_block_innermost.1} parent=5 // pred_check
        _
      $region46: #{unet_skip_block_innermost.1} parent=5 // pred_check_branch
        %252 = sbr.rel (%p249) target = $region48
      $region47: #{unet_skip_block_innermost.1} parent=5 // pred_region
        %s253 = ssub.s32 %s14, 1
        // Predicated region
        $region49: #{unet_skip_block_innermost.1} parent=47 // pred_check
          %p254 = pneg %p61
        $region50: #{unet_skip_block_innermost.1} parent=47 // pred_check_branch
          %256 = sbr.rel (%p254) target = $region52
        $region51: #{unet_skip_block_innermost.1} parent=47 // pred_region
          %257 = dma.done [#allocation3], 512
        $region52: #{unet_skip_block_innermost.1} parent=47 // pred_fallthru
          _
        %p258 = scmp.lt.s32.totalorder %s19, 1
        %s259 = scalar_select %p258, %s19, 1
        %s260 = smul.addr %s259, 2
        %s261 = smul.addr %s260, 4
        %s262 = scalar_lea.vmem %s0, %s261
        %p263 = pneg %p40
        %p264 = pneg %p37
        %p265 = pneg %p61
        %p266 = pneg %p58
        %p267 = pneg %p82
        %p268 = pneg %p79
        %p269 = pneg %p103
        %p270 = pneg %p100
        %p271 = pneg %p124
        %p272 = pneg %p121
        %p273 = pneg %p145
        %p274 = pneg %p142
        %p275 = pneg %p166
        %p276 = pneg %p163
        %p277 = pneg %p192
        %p278 = pneg %p189
        %p279 = scmp.lt.s32.totalorder %s19, 1
        %s280 = scalar_select %p279, %s19, 1
        %s281 = smul.addr %s280, 2
        %s282 = smul.addr %s281, 8
        %s283 = scalar_lea.vmem %s7, %s282
        %p284 = scmp.lt.s32.totalorder %s19, 1
        %s285 = scalar_select %p284, %s19, 1
        %s286 = smul.addr %s285, 2
        %s287 = smul.addr %s286, 4
        %s288 = scalar_lea.vmem %s0, %s287
        %p289 = scmp.lt.s32.totalorder %s19, 1
        %s290 = scalar_select %p289, %s19, 1
        %s291 = smul.addr %s290, 2
        %s292 = smul.addr %s291, 8
        %s293 = scalar_lea.vmem %s7, %s292
        %v294 = vld [vmem:[#allocation2] sm:$0xff]
        %v295 = vld [vmem:[#allocation2 + $0x8] sm:$0xff]
        %v296 = vld [vmem:[#allocation2 + $0x10] sm:$0xf]
        %v297 = vld [vmem:[#allocation2 + $0x18] sm:$0xf]
        %v298 = vld [vmem:[%s2] sm:$0xff]
        %v299 = vld [vmem:[%s2 + $0x8] sm:$0xff]
        %v300 = vld [vmem:[%s2 + $0x10] sm:$0xff]
        %v301 = vld [vmem:[%s2 + $0x18] sm:$0xff]
        %v302 = vld [vmem:[%s2 + $0x20] sm:$0xff]
        %v303 = vld [vmem:[%s2 + $0x28] sm:$0xff]
        %v304 = vld [vmem:[%s2 + $0x30] sm:$0xff]
        %v305 = vld [vmem:[%s2 + $0x38] sm:$0xff]
        %v306 = vld [vmem:[%s2 + $0x40] sm:$0xff]
        %v307 = vld [vmem:[%s2 + $0x48] sm:$0xff]
        %v308 = vld [vmem:[%s2 + $0x50] sm:$0xff]
        %v309 = vld [vmem:[%s2 + $0x58] sm:$0xff]
        %v310 = vld [vmem:[%s2 + $0x60] sm:$0xff]
        %v311 = vld [vmem:[%s2 + $0x68] sm:$0xff]
        %v312 = vld [vmem:[%s2 + $0x70] sm:$0xff]
        %v313 = vld [vmem:[%s2 + $0x78] sm:$0xff]
        %v314 = vld [vmem:[%s2 + $0x80] sm:$0xff]
        %v315 = vld [vmem:[%s2 + $0x88] sm:$0xff]
        %v316 = vld [vmem:[%s2 + $0x90] sm:$0xff]
        %v317 = vld [vmem:[%s2 + $0x98] sm:$0xff]
        %v318 = vld [vmem:[%s2 + $0xa0] sm:$0xff]
        %v319 = vld [vmem:[%s2 + $0xa8] sm:$0xff]
        %v320 = vld [vmem:[%s2 + $0xb0] sm:$0xff]
        %v321 = vld [vmem:[%s2 + $0xb8] sm:$0xff]
        %v322 = vld [vmem:[%s2 + $0xc0] sm:$0xff]
        %v323 = vld [vmem:[%s2 + $0xc8] sm:$0xff]
        %v324 = vld [vmem:[%s2 + $0xd0] sm:$0xff]
        %v325 = vld [vmem:[%s2 + $0xd8] sm:$0xff]
        %v326 = vld [vmem:[%s2 + $0xe0] sm:$0xff]
        %v327 = vld [vmem:[%s2 + $0xe8] sm:$0xff]
        %v328 = vld [vmem:[%s2 + $0xf0] sm:$0xff]
        %v329 = vld [vmem:[%s2 + $0xf8] sm:$0xff]
        %v330 = vld [vmem:[%s3] sm:$0xff]
        %v331 = vld [vmem:[%s3 + $0x8] sm:$0xff]
        %v332 = vld [vmem:[%s3 + $0x10] sm:$0xff]
        %v333 = vld [vmem:[%s3 + $0x18] sm:$0xff]
        %v334 = vld [vmem:[%s3 + $0x20] sm:$0xff]
        %v335 = vld [vmem:[%s3 + $0x28] sm:$0xff]
        %v336 = vld [vmem:[%s3 + $0x30] sm:$0xff]
        %v337 = vld [vmem:[%s3 + $0x38] sm:$0xff]
        %v338 = vld [vmem:[%s3 + $0x40] sm:$0xff]
        %v339 = vld [vmem:[%s4] sm:$0xff]
        %v340 = vld [vmem:[%s4 + $0x8] sm:$0xff]
        %v341 = vld [vmem:[%s4 + $0x10] sm:$0xff]
        %v342 = vld [vmem:[%s4 + $0x18] sm:$0xff]
        %v343 = vld [vmem:[%s4 + $0x20] sm:$0xff]
        %v344 = vld [vmem:[%s4 + $0x28] sm:$0xff]
        %v345 = vld [vmem:[%s4 + $0x30] sm:$0xff]
        %v346 = vld [vmem:[%s4 + $0x38] sm:$0xff]
        %v347 = vld [vmem:[%s4 + $0x40] sm:$0xff]
        %v348 = vld [vmem:[%s5] sm:$0xff]
        %v349 = vld [vmem:[%s5 + $0x8] sm:$0xff]
        %v350 = vld [vmem:[%s6] sm:$0xf]
        %v351 = vld [vmem:[%s288] sm:$0xff]
        %v353 = vcombine.high %v351, %v351
        %355 = vrot.lane.b32.xlu0 %v351, 127
        %v356 = vpop.permute.xlu0 %355
        %357 = vrot.lane.b32.xlu0 %v353, 127
        %v358 = vpop.permute.xlu0 %357
        %v359 = vlaneseq
        %v360 = vand.u32 %v359, 127
        %vm361 = vcmp.lt.s32.totalorder %v360, 127
        %v362 = vsel %vm361, %v356, %v358
        %v363 = vsel %vm361, %v358, %v356
        %v366 = vcombine.low %v362, %v363
        %v368 = vmax.f32 %v351, %v366
        %369 = vrot.lane.b32.xlu0 %v351, 112
        %v370 = vpop.permute.xlu0 %369
        %371 = vrot.lane.b32.xlu0 %v353, 112
        %v372 = vpop.permute.xlu0 %371
        %vm373 = vcmp.lt.s32.totalorder %v360, 112
        %v374 = vsel %vm373, %v370, %v372
        %v375 = vsel %vm373, %v372, %v370
        %376 = vrot.lane.b32.xlu0 %v351, 111
        %v377 = vpop.permute.xlu0 %376
        %378 = vrot.lane.b32.xlu0 %v353, 111
        %v379 = vpop.permute.xlu0 %378
        %vm380 = vcmp.lt.s32.totalorder %v360, 111
        %v381 = vsel %vm380, %v377, %v379
        %v382 = vsel %vm380, %v379, %v377
        %v383 = vmax.f32 %v374, %v381
        %v384 = vmax.f32 %v375, %v382
        %v387 = vcombine.low %v383, %v384
        %v389 = vmax.f32 %v368, %v387
        %v391 = vcombine.high %v389, %v389
        %vm392 = vcmask 31744
        %v394 = vsel %vm392, %v330, 0
        %v397 = vsel %vm392, %v331, 0
        %v400 = vsel %vm392, %v332, 0
        %v403 = vsel %vm392, %v333, 0
        %v406 = vsel %vm392, %v334, 0
        %v409 = vsel %vm392, %v335, 0
        %v412 = vsel %vm392, %v336, 0
        %v415 = vsel %vm392, %v337, 0
        %v418 = vsel %vm392, %v338, 0
        %vm420 = vcmask 1043456
        %v421 = vsel %vm420, %v389, 0
        %v423 = vsel %vm420, %v391, 0
        %425 = vmatprep.subr.mxu0 %v423
        %426 = vmatpush1.msra.mxu0 %v421
        %427 = vmatprep.subr.mxu0 0.0
        %428 = vmatpush1.msra.mxu0 0.0
        %429 = vmatprep.subr.mxu0 0.0
        %430 = vmatpush1.msra.mxu0 0.0
        %431 = vmatprep.subr.mxu0 0.0
        %432 = vmatpush1.msra.mxu0 0.0
        %433 = vmatprep.subr.mxu0 0.0
        %434 = vmatpush1.msra.mxu0 0.0
        %435 = vmatprep.subr.mxu0 0.0
        %436 = vmatpush1.msra.mxu0 0.0
        %437 = vmatprep.subr.mxu0 0.0
        %438 = vmatpush1.msra.mxu0 0.0
        %439 = vmatprep.subr.mxu0 0.0
        %440 = vmatpush1.msra.mxu0 0.0
        %441 = vmatprep.subr.mxu0 0.0
        %442 = vmatpush1.msra.mxu0 0.0
        %443 = vmatprep.subr.mxu0 0.0
        %444 = vmatpush1.msra.mxu0 0.0
        %445 = vmatprep.subr.mxu0 0.0
        %446 = vmatpush1.msra.mxu0 0.0
        %447 = vmatprep.subr.mxu0 0.0
        %448 = vmatpush1.msra.mxu0 0.0
        %449 = vmatprep.subr.mxu0 0.0
        %450 = vmatpush1.msra.mxu0 0.0
        %451 = vmatprep.subr.mxu0 0.0
        %452 = vmatpush1.msra.mxu0 0.0
        %453 = vmatprep.subr.mxu0 0.0
        %454 = vmatpush1.msra.mxu0 0.0
        %455 = vmatprep.subr.mxu0 0.0
        %456 = vmatpush1.msra.mxu0 0.0
        %457 = vmatprep.subr.mxu0 0.0
        %458 = vmatpush1.msra.mxu0 0.0
        %459 = vmatprep.subr.mxu0 0.0
        %460 = vmatpush1.msra.mxu0 0.0
        %461 = vmatprep.subr.mxu0 0.0
        %462 = vmatpush1.msra.mxu0 0.0
        %463 = vmatprep.subr.mxu0 0.0
        %464 = vmatpush1.msra.mxu0 0.0
        %465 = vmatprep.subr.mxu0 0.0
        %466 = vmatpush1.msra.mxu0 0.0
        %467 = vmatprep.subr.mxu0 0.0
        %468 = vmatpush1.msra.mxu0 0.0
        %469 = vmatprep.subr.mxu0 0.0
        %470 = vmatpush1.msra.mxu0 0.0
        %471 = vmatprep.subr.mxu0 0.0
        %472 = vmatpush1.msra.mxu0 0.0
        %473 = vmatprep.subr.mxu0 0.0
        %474 = vmatpush1.msra.mxu0 0.0
        %475 = vmatprep.subr.mxu0 0.0
        %476 = vmatpush1.msra.mxu0 0.0
        %477 = vmatprep.subr.mxu0 0.0
        %478 = vmatpush1.msra.mxu0 0.0
        %479 = vmatprep.subr.mxu0 0.0
        %480 = vmatpush1.msra.mxu0 0.0
        %481 = vmatprep.subr.mxu0 0.0
        %482 = vmatpush1.msra.mxu0 0.0
        %483 = vmatprep.subr.mxu0 0.0
        %484 = vmatpush1.msra.mxu0 0.0
        %485 = vmatprep.subr.mxu0 0.0
        %486 = vmatpush1.msra.mxu0 0.0
        %487 = vmatprep.subr.mxu0 0.0
        %488 = vmatpush1.msra.mxu0 0.0
        %489 = vmatprep.mubr.f32.mxu0 0.0
        %490 = vmatmul.mubr.f32.gmra.mrb[0].mxu0 %v394
        %v491 = vpop.f32.mrb[0].mxu0
        %v492 = vadd.f32 0.0, %v491
        %v493 = vpop.f32.mrb[0].mxu0
        %v494 = vadd.f32 0.0, %v493
        %495 = vmatprep.mubr.f32.mxu0 0.0
        %496 = vmatmul.mubr.f32.gmra.mrb[0].mxu0 %v397
        %v497 = vpop.f32.mrb[0].mxu0
        %v498 = vadd.f32 0.0, %v497
        %v499 = vpop.f32.mrb[0].mxu0
        %v500 = vadd.f32 0.0, %v499
        %501 = vmatprep.mubr.f32.mxu0 0.0
        %502 = vmatmul.mubr.f32.gmra.mrb[0].mxu0 %v400
        %v503 = vpop.f32.mrb[0].mxu0
        %v504 = vadd.f32 0.0, %v503
        %v505 = vpop.f32.mrb[0].mxu0
        %v506 = vadd.f32 0.0, %v505
        %507 = vmatprep.mubr.f32.mxu0 0.0
        %508 = vmatmul.mubr.f32.gmra.mrb[0].mxu0 %v403
        %v509 = vpop.f32.mrb[0].mxu0
        %v510 = vadd.f32 0.0, %v509
        %v511 = vpop.f32.mrb[0].mxu0
        %v512 = vadd.f32 0.0, %v511
        %513 = vmatprep.mubr.f32.mxu0 0.0
        %514 = vmatmul.mubr.f32.gmra.mrb[0].mxu0 %v406
        %v515 = vpop.f32.mrb[0].mxu0
        %v516 = vadd.f32 0.0, %v515
        %v517 = vpop.f32.mrb[0].mxu0
        %v518 = vadd.f32 0.0, %v517
        %519 = vmatprep.mubr.f32.mxu0 0.0
        %520 = vmatmul.mubr.f32.gmra.mrb[0].mxu0 %v409
        %v521 = vpop.f32.mrb[0].mxu0
        %v522 = vadd.f32 0.0, %v521
        %v523 = vpop.f32.mrb[0].mxu0
        %v524 = vadd.f32 0.0, %v523
        %525 = vmatprep.mubr.f32.mxu0 0.0
        %526 = vmatmul.mubr.f32.gmra.mrb[0].mxu0 %v412
        %v527 = vpop.f32.mrb[0].mxu0
        %v528 = vadd.f32 0.0, %v527
        %v529 = vpop.f32.mrb[0].mxu0
        %v530 = vadd.f32 0.0, %v529
        %531 = vmatprep.mubr.f32.mxu0 0.0
        %532 = vmatmul.mubr.f32.gmra.mrb[0].mxu0 %v415
        %v533 = vpop.f32.mrb[0].mxu0
        %v534 = vadd.f32 0.0, %v533
        %v535 = vpop.f32.mrb[0].mxu0
        %v536 = vadd.f32 0.0, %v535
        %537 = vmatprep.mubr.f32.mxu0 0.0
        %538 = vmatmul.mubr.f32.gmra.mrb[0].mxu0 %v418
        %v539 = vpop.f32.mrb[0].mxu0
        %v540 = vadd.f32 0.0, %v539
        %v541 = vpop.f32.mrb[0].mxu0
        %v542 = vadd.f32 0.0, %v541
        %543 = vdwg.mxu0
        %544 = vrot.lane.b32.xlu0 %v492, 34
        %v545 = vpop.permute.xlu0 %544
        %546 = vrot.lane.b32.xlu0 %v494, 34
        %v547 = vpop.permute.xlu0 %546
        %vm548 = vcmp.lt.s32.totalorder %v360, 34
        %v549 = vsel %vm548, %v545, %v547
        %v550 = vsel %vm548, %v547, %v545
        %v551 = vlaneseq
        %v552 = vshrl.u32 %v551, 7
        %v553 = vsub.s32 1, %v552
        %v554 = vrot.slane %v294, %v553
        %v555 = vlaneseq
        %v556 = vshrl.u32 %v555, 7
        %v557 = vsub.s32 1, %v556
        %v558 = vrot.slane %v295, %v557
        %v559 = vmul.f32 %v554, %v550
        %v560 = vmul.f32 %v558, %v549
        %v561 = vadd.f32 %v516, %v559
        %v562 = vadd.f32 %v518, %v560
        %563 = vrot.lane.b32.xlu0 %v498, 32
        %v564 = vpop.permute.xlu0 %563
        %565 = vrot.lane.b32.xlu0 %v500, 32
        %v566 = vpop.permute.xlu0 %565
        %vm567 = vcmp.lt.s32.totalorder %v360, 32
        %v568 = vsel %vm567, %v564, %v566
        %v569 = vsel %vm567, %v566, %v564
        %v570 = vlaneseq
        %v571 = vshrl.u32 %v570, 7
        %v572 = vsub.s32 2, %v571
        %v573 = vrot.slane %v294, %v572
        %v574 = vlaneseq
        %v575 = vshrl.u32 %v574, 7
        %v576 = vsub.s32 2, %v575
        %v577 = vrot.slane %v295, %v576
        %v578 = vmul.f32 %v573, %v569
        %v579 = vmul.f32 %v577, %v568
        %v580 = vadd.f32 %v561, %v578
        %v581 = vadd.f32 %v562, %v579
        %582 = vrot.lane.b32.xlu0 %v504, 30
        %v583 = vpop.permute.xlu0 %582
        %584 = vrot.lane.b32.xlu0 %v506, 30
        %v585 = vpop.permute.xlu0 %584
        %vm586 = vcmp.lt.s32.totalorder %v360, 30
        %v587 = vsel %vm586, %v583, %v585
        %v588 = vsel %vm586, %v585, %v583
        %v589 = vlaneseq
        %v590 = vshrl.u32 %v589, 7
        %v591 = vsub.s32 3, %v590
        %v592 = vrot.slane %v294, %v591
        %v593 = vlaneseq
        %v594 = vshrl.u32 %v593, 7
        %v595 = vsub.s32 3, %v594
        %v596 = vrot.slane %v295, %v595
        %v597 = vmul.f32 %v592, %v588
        %v598 = vmul.f32 %v596, %v587
        %v599 = vadd.f32 %v580, %v597
        %v600 = vadd.f32 %v581, %v598
        %601 = vrot.lane.b32.xlu0 %v510, 2
        %v602 = vpop.permute.xlu0 %601
        %603 = vrot.lane.b32.xlu0 %v512, 2
        %v604 = vpop.permute.xlu0 %603
        %vm605 = vcmp.lt.s32.totalorder %v360, 2
        %v606 = vsel %vm605, %v602, %v604
        %v607 = vsel %vm605, %v604, %v602
        %v608 = vlaneseq
        %v609 = vshrl.u32 %v608, 7
        %v610 = vsub.s32 4, %v609
        %v611 = vrot.slane %v294, %v610
        %v612 = vlaneseq
        %v613 = vshrl.u32 %v612, 7
        %v614 = vsub.s32 4, %v613
        %v615 = vrot.slane %v295, %v614
        %v616 = vmul.f32 %v611, %v607
        %v617 = vmul.f32 %v615, %v606
        %v618 = vadd.f32 %v599, %v616
        %v619 = vadd.f32 %v600, %v617
        %620 = vrot.lane.b32.xlu0 %v522, 126
        %v621 = vpop.permute.xlu0 %620
        %622 = vrot.lane.b32.xlu0 %v524, 126
        %v623 = vpop.permute.xlu0 %622
        %vm624 = vcmp.lt.s32.totalorder %v360, 126
        %v625 = vsel %vm624, %v621, %v623
        %v626 = vsel %vm624, %v623, %v621
        %v627 = vlaneseq
        %v628 = vshrl.u32 %v627, 7
        %v629 = vsub.s32 5, %v628
        %v630 = vrot.slane %v294, %v629
        %v631 = vlaneseq
        %v632 = vshrl.u32 %v631, 7
        %v633 = vsub.s32 5, %v632
        %v634 = vrot.slane %v295, %v633
        %v635 = vmul.f32 %v630, %v625
        %v636 = vmul.f32 %v634, %v626
        %v637 = vadd.f32 %v618, %v635
        %v638 = vadd.f32 %v619, %v636
        %639 = vrot.lane.b32.xlu0 %v528, 98
        %v640 = vpop.permute.xlu0 %639
        %641 = vrot.lane.b32.xlu0 %v530, 98
        %v642 = vpop.permute.xlu0 %641
        %vm643 = vcmp.lt.s32.totalorder %v360, 98
        %v644 = vsel %vm643, %v640, %v642
        %v645 = vsel %vm643, %v642, %v640
        %v646 = vlaneseq
        %v647 = vshrl.u32 %v646, 7
        %v648 = vsub.s32 6, %v647
        %v649 = vrot.slane %v294, %v648
        %v650 = vlaneseq
        %v651 = vshrl.u32 %v650, 7
        %v652 = vsub.s32 6, %v651
        %v653 = vrot.slane %v295, %v652
        %v654 = vmul.f32 %v649, %v644
        %v655 = vmul.f32 %v653, %v645
        %v656 = vadd.f32 %v637, %v654
        %v657 = vadd.f32 %v638, %v655
        %658 = vrot.lane.b32.xlu0 %v534, 96
        %v659 = vpop.permute.xlu0 %658
        %660 = vrot.lane.b32.xlu0 %v536, 96
        %v661 = vpop.permute.xlu0 %660
        %vm662 = vcmp.lt.s32.totalorder %v360, 96
        %v663 = vsel %vm662, %v659, %v661
        %v664 = vsel %vm662, %v661, %v659
        %v665 = vlaneseq
        %v666 = vshrl.u32 %v665, 7
        %v667 = vsub.s32 7, %v666
        %v668 = vrot.slane %v294, %v667
        %v669 = vlaneseq
        %v670 = vshrl.u32 %v669, 7
        %v671 = vsub.s32 7, %v670
        %v672 = vrot.slane %v295, %v671
        %v673 = vmul.f32 %v668, %v663
        %v674 = vmul.f32 %v672, %v664
        %v675 = vadd.f32 %v656, %v673
        %v676 = vadd.f32 %v657, %v674
        %677 = vrot.lane.b32.xlu0 %v540, 94
        %v678 = vpop.permute.xlu0 %677
        %679 = vrot.lane.b32.xlu0 %v542, 94
        %v680 = vpop.permute.xlu0 %679
        %vm681 = vcmp.lt.s32.totalorder %v360, 94
        %v682 = vsel %vm681, %v678, %v680
        %v683 = vsel %vm681, %v680, %v678
        %v684 = vlaneseq
        %v685 = vshrl.u32 %v684, 7
        %v686 = vsub.s32 0, %v685
        %v687 = vrot.slane %v296, %v686
        %v688 = vlaneseq
        %v689 = vshrl.u32 %v688, 7
        %v690 = vsub.s32 0, %v689
        %v691 = vrot.slane %v297, %v690
        %v692 = vmul.f32 %v687, %v682
        %v693 = vmul.f32 %v691, %v683
        %v694 = vadd.f32 %v675, %v692
        %v695 = vadd.f32 %v676, %v693
        %696 = vmatprep.subr.mxu0 0.0
        %697 = vmatpush1.msra.mxu0 %v298
        %698 = vmatprep.subr.mxu0 0.0
        %699 = vmatpush1.msra.mxu0 %v299
        %700 = vmatprep.subr.mxu0 0.0
        %701 = vmatpush1.msra.mxu0 %v300
        %702 = vmatprep.subr.mxu0 0.0
        %703 = vmatpush1.msra.mxu0 %v301
        %704 = vmatprep.subr.mxu0 0.0
        %705 = vmatpush1.msra.mxu0 %v302
        %706 = vmatprep.subr.mxu0 0.0
        %707 = vmatpush1.msra.mxu0 %v303
        %708 = vmatprep.subr.mxu0 0.0
        %709 = vmatpush1.msra.mxu0 %v304
        %710 = vmatprep.subr.mxu0 0.0
        %711 = vmatpush1.msra.mxu0 %v305
        %712 = vmatprep.subr.mxu0 0.0
        %713 = vmatpush1.msra.mxu0 %v306
        %714 = vmatprep.subr.mxu0 0.0
        %715 = vmatpush1.msra.mxu0 %v307
        %716 = vmatprep.subr.mxu0 0.0
        %717 = vmatpush1.msra.mxu0 %v308
        %718 = vmatprep.subr.mxu0 0.0
        %719 = vmatpush1.msra.mxu0 %v309
        %720 = vmatprep.subr.mxu0 0.0
        %721 = vmatpush1.msra.mxu0 %v310
        %722 = vmatprep.subr.mxu0 0.0
        %723 = vmatpush1.msra.mxu0 %v311
        %724 = vmatprep.subr.mxu0 0.0
        %725 = vmatpush1.msra.mxu0 %v312
        %726 = vmatprep.subr.mxu0 0.0
        %727 = vmatpush1.msra.mxu0 %v313
        %728 = vmatprep.subr.mxu0 0.0
        %729 = vmatpush1.msra.mxu0 %v314
        %730 = vmatprep.subr.mxu0 0.0
        %731 = vmatpush1.msra.mxu0 %v315
        %732 = vmatprep.subr.mxu0 0.0
        %733 = vmatpush1.msra.mxu0 %v316
        %734 = vmatprep.subr.mxu0 0.0
        %735 = vmatpush1.msra.mxu0 %v317
        %736 = vmatprep.subr.mxu0 0.0
        %737 = vmatpush1.msra.mxu0 %v318
        %738 = vmatprep.subr.mxu0 0.0
        %739 = vmatpush1.msra.mxu0 %v319
        %740 = vmatprep.subr.mxu0 0.0
        %741 = vmatpush1.msra.mxu0 %v320
        %742 = vmatprep.subr.mxu0 0.0
        %743 = vmatpush1.msra.mxu0 %v321
        %744 = vmatprep.subr.mxu0 0.0
        %745 = vmatpush1.msra.mxu0 %v322
        %746 = vmatprep.subr.mxu0 0.0
        %747 = vmatpush1.msra.mxu0 %v323
        %748 = vmatprep.subr.mxu0 0.0
        %749 = vmatpush1.msra.mxu0 %v324
        %750 = vmatprep.subr.mxu0 0.0
        %751 = vmatpush1.msra.mxu0 %v325
        %752 = vmatprep.subr.mxu0 0.0
        %753 = vmatpush1.msra.mxu0 %v326
        %754 = vmatprep.subr.mxu0 0.0
        %755 = vmatpush1.msra.mxu0 %v327
        %756 = vmatprep.subr.mxu0 0.0
        %757 = vmatpush1.msra.mxu0 %v328
        %758 = vmatprep.subr.mxu0 0.0
        %759 = vmatpush1.msra.mxu0 %v329
        %760 = vmatprep.mubr.f32.mxu0 %v695
        %761 = vmatmul.mubr.f32.gmra.mrb[0].mxu0 %v694
        %v762 = vpop.f32.mrb[0].mxu0
        %v763 = vadd.f32 0.0, %v762
        %v764 = vpop.f32.mrb[0].mxu0
        %765 = vdwg.mxu0
        %767 = vset.pattern.permute.xlu0 0
        %768 = vperm.xlu0 %767, %v763
        %v769 = vpop.permute.xlu0 %768
        %v771 = vsub.f32 %v694, %v769
        %v772 = vsub.f32 %v695, %v769
        %v773 = vmul.f32 %v771, %v771
        %v774 = vmul.f32 %v772, %v772
        %775 = vmatprep.subr.mxu0 0.0
        %776 = vmatpush1.msra.mxu0 %v298
        %777 = vmatprep.subr.mxu0 0.0
        %778 = vmatpush1.msra.mxu0 %v299
        %779 = vmatprep.subr.mxu0 0.0
        %780 = vmatpush1.msra.mxu0 %v300
        %781 = vmatprep.subr.mxu0 0.0
        %782 = vmatpush1.msra.mxu0 %v301
        %783 = vmatprep.subr.mxu0 0.0
        %784 = vmatpush1.msra.mxu0 %v302
        %785 = vmatprep.subr.mxu0 0.0
        %786 = vmatpush1.msra.mxu0 %v303
        %787 = vmatprep.subr.mxu0 0.0
        %788 = vmatpush1.msra.mxu0 %v304
        %789 = vmatprep.subr.mxu0 0.0
        %790 = vmatpush1.msra.mxu0 %v305
        %791 = vmatprep.subr.mxu0 0.0
        %792 = vmatpush1.msra.mxu0 %v306
        %793 = vmatprep.subr.mxu0 0.0
        %794 = vmatpush1.msra.mxu0 %v307
        %795 = vmatprep.subr.mxu0 0.0
        %796 = vmatpush1.msra.mxu0 %v308
        %797 = vmatprep.subr.mxu0 0.0
        %798 = vmatpush1.msra.mxu0 %v309
        %799 = vmatprep.subr.mxu0 0.0
        %800 = vmatpush1.msra.mxu0 %v310
        %801 = vmatprep.subr.mxu0 0.0
        %802 = vmatpush1.msra.mxu0 %v311
        %803 = vmatprep.subr.mxu0 0.0
        %804 = vmatpush1.msra.mxu0 %v312
        %805 = vmatprep.subr.mxu0 0.0
        %806 = vmatpush1.msra.mxu0 %v313
        %807 = vmatprep.subr.mxu0 0.0
        %808 = vmatpush1.msra.mxu0 %v314
        %809 = vmatprep.subr.mxu0 0.0
        %810 = vmatpush1.msra.mxu0 %v315
        %811 = vmatprep.subr.mxu0 0.0
        %812 = vmatpush1.msra.mxu0 %v316
        %813 = vmatprep.subr.mxu0 0.0
        %814 = vmatpush1.msra.mxu0 %v317
        %815 = vmatprep.subr.mxu0 0.0
        %816 = vmatpush1.msra.mxu0 %v318
        %817 = vmatprep.subr.mxu0 0.0
        %818 = vmatpush1.msra.mxu0 %v319
        %819 = vmatprep.subr.mxu0 0.0
        %820 = vmatpush1.msra.mxu0 %v320
        %821 = vmatprep.subr.mxu0 0.0
        %822 = vmatpush1.msra.mxu0 %v321
        %823 = vmatprep.subr.mxu0 0.0
        %824 = vmatpush1.msra.mxu0 %v322
        %825 = vmatprep.subr.mxu0 0.0
        %826 = vmatpush1.msra.mxu0 %v323
        %827 = vmatprep.subr.mxu0 0.0
        %828 = vmatpush1.msra.mxu0 %v324
        %829 = vmatprep.subr.mxu0 0.0
        %830 = vmatpush1.msra.mxu0 %v325
        %831 = vmatprep.subr.mxu0 0.0
        %832 = vmatpush1.msra.mxu0 %v326
        %833 = vmatprep.subr.mxu0 0.0
        %834 = vmatpush1.msra.mxu0 %v327
        %835 = vmatprep.subr.mxu0 0.0
        %836 = vmatpush1.msra.mxu0 %v328
        %837 = vmatprep.subr.mxu0 0.0
        %838 = vmatpush1.msra.mxu0 %v329
        %839 = vmatprep.mubr.f32.mxu0 %v774
        %840 = vmatmul.mubr.f32.gmra.mrb[0].mxu0 %v773
        %v841 = vpop.f32.mrb[0].mxu0
        %v842 = vadd.f32 1e-05, %v841
        %v843 = vpop.f32.mrb[0].mxu0
        %844 = vdwg.mxu0
        %v845 = vrsqrt.pop %v842
        %847 = vset.pattern.permute.xlu0 0
        %848 = vperm.xlu0 %847, %v845
        %v849 = vpop.permute.xlu0 %848
        %v851 = vmul.f32 %v771, %v849
        %v852 = vmul.f32 %v772, %v849
        %vm853 = vcmp.ge.f32.partialorder %v851, 0.0
        %vm854 = vcmp.ge.f32.partialorder %v852, 0.0
        %v855 = vmul.f32 %v851, 0.01
        %v856 = vmul.f32 %v852, 0.01
        %v857 = vsel %vm853, %v851, %v855
        %v858 = vsel %vm854, %v852, %v856
        %vm859 = vcmask 64512
        %v861 = vsel %vm859, %v339, 0
        %v864 = vsel %vm859, %v340, 0
        %v867 = vsel %vm859, %v341, 0
        %v870 = vsel %vm859, %v342, 0
        %v873 = vsel %vm859, %v343, 0
        %v876 = vsel %vm859, %v344, 0
        %v879 = vsel %vm859, %v345, 0
        %v882 = vsel %vm859, %v346, 0
        %v885 = vsel %vm859, %v347, 0
        %887 = vmatprep.subr.mxu0 %v858
        %888 = vmatpush1.msra.mxu0 %v857
        %889 = vmatprep.subr.mxu0 0.0
        %890 = vmatpush1.msra.mxu0 0.0
        %891 = vmatprep.subr.mxu0 0.0
        %892 = vmatpush1.msra.mxu0 0.0
        %893 = vmatprep.subr.mxu0 0.0
        %894 = vmatpush1.msra.mxu0 0.0
        %895 = vmatprep.subr.mxu0 0.0
        %896 = vmatpush1.msra.mxu0 0.0
        %897 = vmatprep.subr.mxu0 0.0
        %898 = vmatpush1.msra.mxu0 0.0
        %899 = vmatprep.subr.mxu0 0.0
        %900 = vmatpush1.msra.mxu0 0.0
        %901 = vmatprep.subr.mxu0 0.0
        %902 = vmatpush1.msra.mxu0 0.0
        %903 = vmatprep.subr.mxu0 0.0
        %904 = vmatpush1.msra.mxu0 0.0
        %905 = vmatprep.subr.mxu0 0.0
        %906 = vmatpush1.msra.mxu0 0.0
        %907 = vmatprep.subr.mxu0 0.0
        %908 = vmatpush1.msra.mxu0 0.0
        %909 = vmatprep.subr.mxu0 0.0
        %910 = vmatpush1.msra.mxu0 0.0
        %911 = vmatprep.subr.mxu0 0.0
        %912 = vmatpush1.msra.mxu0 0.0
        %913 = vmatprep.subr.mxu0 0.0
        %914 = vmatpush1.msra.mxu0 0.0
        %915 = vmatprep.subr.mxu0 0.0
        %916 = vmatpush1.msra.mxu0 0.0
        %917 = vmatprep.subr.mxu0 0.0
        %918 = vmatpush1.msra.mxu0 0.0
        %919 = vmatprep.subr.mxu0 0.0
        %920 = vmatpush1.msra.mxu0 0.0
        %921 = vmatprep.subr.mxu0 0.0
        %922 = vmatpush1.msra.mxu0 0.0
        %923 = vmatprep.subr.mxu0 0.0
        %924 = vmatpush1.msra.mxu0 0.0
        %925 = vmatprep.subr.mxu0 0.0
        %926 = vmatpush1.msra.mxu0 0.0
        %927 = vmatprep.subr.mxu0 0.0
        %928 = vmatpush1.msra.mxu0 0.0
        %929 = vmatprep.subr.mxu0 0.0
        %930 = vmatpush1.msra.mxu0 0.0
        %931 = vmatprep.subr.mxu0 0.0
        %932 = vmatpush1.msra.mxu0 0.0
        %933 = vmatprep.subr.mxu0 0.0
        %934 = vmatpush1.msra.mxu0 0.0
        %935 = vmatprep.subr.mxu0 0.0
        %936 = vmatpush1.msra.mxu0 0.0
        %937 = vmatprep.subr.mxu0 0.0
        %938 = vmatpush1.msra.mxu0 0.0
        %939 = vmatprep.subr.mxu0 0.0
        %940 = vmatpush1.msra.mxu0 0.0
        %941 = vmatprep.subr.mxu0 0.0
        %942 = vmatpush1.msra.mxu0 0.0
        %943 = vmatprep.subr.mxu0 0.0
        %944 = vmatpush1.msra.mxu0 0.0
        %945 = vmatprep.subr.mxu0 0.0
        %946 = vmatpush1.msra.mxu0 0.0
        %947 = vmatprep.subr.mxu0 0.0
        %948 = vmatpush1.msra.mxu0 0.0
        %949 = vmatprep.subr.mxu0 0.0
        %950 = vmatpush1.msra.mxu0 0.0
        %951 = vmatprep.mubr.f32.mxu0 0.0
        %952 = vmatmul.mubr.f32.gmra.mrb[0].mxu0 %v861
        %v953 = vpop.f32.mrb[0].mxu0
        %v954 = vadd.f32 0.0, %v953
        %v955 = vpop.f32.mrb[0].mxu0
        %v956 = vadd.f32 0.0, %v955
        %957 = vmatprep.mubr.f32.mxu0 0.0
        %958 = vmatmul.mubr.f32.gmra.mrb[0].mxu0 %v864
        %v959 = vpop.f32.mrb[0].mxu0
        %v960 = vadd.f32 0.0, %v959
        %v961 = vpop.f32.mrb[0].mxu0
        %v962 = vadd.f32 0.0, %v961
        %963 = vmatprep.mubr.f32.mxu0 0.0
        %964 = vmatmul.mubr.f32.gmra.mrb[0].mxu0 %v867
        %v965 = vpop.f32.mrb[0].mxu0
        %v966 = vadd.f32 0.0, %v965
        %v967 = vpop.f32.mrb[0].mxu0
        %v968 = vadd.f32 0.0, %v967
        %969 = vmatprep.mubr.f32.mxu0 0.0
        %970 = vmatmul.mubr.f32.gmra.mrb[0].mxu0 %v870
        %v971 = vpop.f32.mrb[0].mxu0
        %v972 = vadd.f32 0.0, %v971
        %v973 = vpop.f32.mrb[0].mxu0
        %v974 = vadd.f32 0.0, %v973
        %975 = vmatprep.mubr.f32.mxu0 0.0
        %976 = vmatmul.mubr.f32.gmra.mrb[0].mxu0 %v873
        %v977 = vpop.f32.mrb[0].mxu0
        %v978 = vadd.f32 0.0, %v977
        %v979 = vpop.f32.mrb[0].mxu0
        %v980 = vadd.f32 0.0, %v979
        %981 = vmatprep.mubr.f32.mxu0 0.0
        %982 = vmatmul.mubr.f32.gmra.mrb[0].mxu0 %v876
        %v983 = vpop.f32.mrb[0].mxu0
        %v984 = vadd.f32 0.0, %v983
        %v985 = vpop.f32.mrb[0].mxu0
        %v986 = vadd.f32 0.0, %v985
        %987 = vmatprep.mubr.f32.mxu0 0.0
        %988 = vmatmul.mubr.f32.gmra.mrb[0].mxu0 %v879
        %v989 = vpop.f32.mrb[0].mxu0
        %v990 = vadd.f32 0.0, %v989
        %v991 = vpop.f32.mrb[0].mxu0
        %v992 = vadd.f32 0.0, %v991
        %993 = vmatprep.mubr.f32.mxu0 0.0
        %994 = vmatmul.mubr.f32.gmra.mrb[0].mxu0 %v882
        %v995 = vpop.f32.mrb[0].mxu0
        %v996 = vadd.f32 0.0, %v995
        %v997 = vpop.f32.mrb[0].mxu0
        %v998 = vadd.f32 0.0, %v997
        %999 = vmatprep.mubr.f32.mxu0 0.0
        %1000 = vmatmul.mubr.f32.gmra.mrb[0].mxu0 %v885
        %v1001 = vpop.f32.mrb[0].mxu0
        %v1002 = vadd.f32 0.0, %v1001
        %v1003 = vpop.f32.mrb[0].mxu0
        %v1004 = vadd.f32 0.0, %v1003
        %1005 = vdwg.mxu0
        %1006 = vrot.lane.b32.xlu0 %v954, 34
        %v1007 = vpop.permute.xlu0 %1006
        %1008 = vrot.lane.b32.xlu0 %v956, 34
        %v1009 = vpop.permute.xlu0 %1008
        %v1010 = vsel %vm548, %v1007, %v1009
        %v1011 = vsel %vm548, %v1009, %v1007
        %v1012 = vmul.f32 %v554, %v1011
        %v1013 = vmul.f32 %v558, %v1010
        %v1014 = vadd.f32 %v978, %v1012
        %v1015 = vadd.f32 %v980, %v1013
        %1016 = vrot.lane.b32.xlu0 %v960, 32
        %v1017 = vpop.permute.xlu0 %1016
        %1018 = vrot.lane.b32.xlu0 %v962, 32
        %v1019 = vpop.permute.xlu0 %1018
        %v1020 = vsel %vm567, %v1017, %v1019
        %v1021 = vsel %vm567, %v1019, %v1017
        %v1022 = vmul.f32 %v573, %v1021
        %v1023 = vmul.f32 %v577, %v1020
        %v1024 = vadd.f32 %v1014, %v1022
        %v1025 = vadd.f32 %v1015, %v1023
        %1026 = vrot.lane.b32.xlu0 %v966, 30
        %v1027 = vpop.permute.xlu0 %1026
        %1028 = vrot.lane.b32.xlu0 %v968, 30
        %v1029 = vpop.permute.xlu0 %1028
        %v1030 = vsel %vm586, %v1027, %v1029
        %v1031 = vsel %vm586, %v1029, %v1027
        %v1032 = vmul.f32 %v592, %v1031
        %v1033 = vmul.f32 %v596, %v1030
        %v1034 = vadd.f32 %v1024, %v1032
        %v1035 = vadd.f32 %v1025, %v1033
        %1036 = vrot.lane.b32.xlu0 %v972, 2
        %v1037 = vpop.permute.xlu0 %1036
        %1038 = vrot.lane.b32.xlu0 %v974, 2
        %v1039 = vpop.permute.xlu0 %1038
        %v1040 = vsel %vm605, %v1037, %v1039
        %v1041 = vsel %vm605, %v1039, %v1037
        %v1042 = vmul.f32 %v611, %v1041
        %v1043 = vmul.f32 %v615, %v1040
        %v1044 = vadd.f32 %v1034, %v1042
        %v1045 = vadd.f32 %v1035, %v1043
        %1046 = vrot.lane.b32.xlu0 %v984, 126
        %v1047 = vpop.permute.xlu0 %1046
        %1048 = vrot.lane.b32.xlu0 %v986, 126
        %v1049 = vpop.permute.xlu0 %1048
        %v1050 = vsel %vm624, %v1047, %v1049
        %v1051 = vsel %vm624, %v1049, %v1047
        %v1052 = vmul.f32 %v630, %v1050
        %v1053 = vmul.f32 %v634, %v1051
        %v1054 = vadd.f32 %v1044, %v1052
        %v1055 = vadd.f32 %v1045, %v1053
        %1056 = vrot.lane.b32.xlu0 %v990, 98
        %v1057 = vpop.permute.xlu0 %1056
        %1058 = vrot.lane.b32.xlu0 %v992, 98
        %v1059 = vpop.permute.xlu0 %1058
        %v1060 = vsel %vm643, %v1057, %v1059
        %v1061 = vsel %vm643, %v1059, %v1057
        %v1062 = vmul.f32 %v649, %v1060
        %v1063 = vmul.f32 %v653, %v1061
        %v1064 = vadd.f32 %v1054, %v1062
        %v1065 = vadd.f32 %v1055, %v1063
        %1066 = vrot.lane.b32.xlu0 %v996, 96
        %v1067 = vpop.permute.xlu0 %1066
        %1068 = vrot.lane.b32.xlu0 %v998, 96
        %v1069 = vpop.permute.xlu0 %1068
        %v1070 = vsel %vm662, %v1067, %v1069
        %v1071 = vsel %vm662, %v1069, %v1067
        %v1072 = vmul.f32 %v668, %v1070
        %v1073 = vmul.f32 %v672, %v1071
        %v1074 = vadd.f32 %v1064, %v1072
        %v1075 = vadd.f32 %v1065, %v1073
        %1076 = vrot.lane.b32.xlu0 %v1002, 94
        %v1077 = vpop.permute.xlu0 %1076
        %1078 = vrot.lane.b32.xlu0 %v1004, 94
        %v1079 = vpop.permute.xlu0 %1078
        %v1080 = vsel %vm681, %v1077, %v1079
        %v1081 = vsel %vm681, %v1079, %v1077
        %v1082 = vmul.f32 %v687, %v1080
        %v1083 = vmul.f32 %v691, %v1081
        %v1084 = vadd.f32 %v1074, %v1082
        %v1085 = vadd.f32 %v1075, %v1083
        %1086 = vmatprep.subr.mxu0 0.0
        %1087 = vmatpush1.msra.mxu0 %v298
        %1088 = vmatprep.subr.mxu0 0.0
        %1089 = vmatpush1.msra.mxu0 %v299
        %1090 = vmatprep.subr.mxu0 0.0
        %1091 = vmatpush1.msra.mxu0 %v300
        %1092 = vmatprep.subr.mxu0 0.0
        %1093 = vmatpush1.msra.mxu0 %v301
        %1094 = vmatprep.subr.mxu0 0.0
        %1095 = vmatpush1.msra.mxu0 %v302
        %1096 = vmatprep.subr.mxu0 0.0
        %1097 = vmatpush1.msra.mxu0 %v303
        %1098 = vmatprep.subr.mxu0 0.0
        %1099 = vmatpush1.msra.mxu0 %v304
        %1100 = vmatprep.subr.mxu0 0.0
        %1101 = vmatpush1.msra.mxu0 %v305
        %1102 = vmatprep.subr.mxu0 0.0
        %1103 = vmatpush1.msra.mxu0 %v306
        %1104 = vmatprep.subr.mxu0 0.0
        %1105 = vmatpush1.msra.mxu0 %v307
        %1106 = vmatprep.subr.mxu0 0.0
        %1107 = vmatpush1.msra.mxu0 %v308
        %1108 = vmatprep.subr.mxu0 0.0
        %1109 = vmatpush1.msra.mxu0 %v309
        %1110 = vmatprep.subr.mxu0 0.0
        %1111 = vmatpush1.msra.mxu0 %v310
        %1112 = vmatprep.subr.mxu0 0.0
        %1113 = vmatpush1.msra.mxu0 %v311
        %1114 = vmatprep.subr.mxu0 0.0
        %1115 = vmatpush1.msra.mxu0 %v312
        %1116 = vmatprep.subr.mxu0 0.0
        %1117 = vmatpush1.msra.mxu0 %v313
        %1118 = vmatprep.subr.mxu0 0.0
        %1119 = vmatpush1.msra.mxu0 %v314
        %1120 = vmatprep.subr.mxu0 0.0
        %1121 = vmatpush1.msra.mxu0 %v315
        %1122 = vmatprep.subr.mxu0 0.0
        %1123 = vmatpush1.msra.mxu0 %v316
        %1124 = vmatprep.subr.mxu0 0.0
        %1125 = vmatpush1.msra.mxu0 %v317
        %1126 = vmatprep.subr.mxu0 0.0
        %1127 = vmatpush1.msra.mxu0 %v318
        %1128 = vmatprep.subr.mxu0 0.0
        %1129 = vmatpush1.msra.mxu0 %v319
        %1130 = vmatprep.subr.mxu0 0.0
        %1131 = vmatpush1.msra.mxu0 %v320
        %1132 = vmatprep.subr.mxu0 0.0
        %1133 = vmatpush1.msra.mxu0 %v321
        %1134 = vmatprep.subr.mxu0 0.0
        %1135 = vmatpush1.msra.mxu0 %v322
        %1136 = vmatprep.subr.mxu0 0.0
        %1137 = vmatpush1.msra.mxu0 %v323
        %1138 = vmatprep.subr.mxu0 0.0
        %1139 = vmatpush1.msra.mxu0 %v324
        %1140 = vmatprep.subr.mxu0 0.0
        %1141 = vmatpush1.msra.mxu0 %v325
        %1142 = vmatprep.subr.mxu0 0.0
        %1143 = vmatpush1.msra.mxu0 %v326
        %1144 = vmatprep.subr.mxu0 0.0
        %1145 = vmatpush1.msra.mxu0 %v327
        %1146 = vmatprep.subr.mxu0 0.0
        %1147 = vmatpush1.msra.mxu0 %v328
        %1148 = vmatprep.subr.mxu0 0.0
        %1149 = vmatpush1.msra.mxu0 %v329
        %1150 = vmatprep.mubr.f32.mxu0 %v1085
        %1151 = vmatmul.mubr.f32.gmra.mrb[0].mxu0 %v1084
        %v1152 = vpop.f32.mrb[0].mxu0
        %v1153 = vadd.f32 0.0, %v1152
        %v1154 = vpop.f32.mrb[0].mxu0
        %1155 = vdwg.mxu0
        %1157 = vset.pattern.permute.xlu0 0
        %1158 = vperm.xlu0 %1157, %v1153
        %v1159 = vpop.permute.xlu0 %1158
        %v1161 = vsub.f32 %v1084, %v1159
        %v1162 = vsub.f32 %v1085, %v1159
        %v1163 = vmul.f32 %v1161, %v1161
        %v1164 = vmul.f32 %v1162, %v1162
        %1165 = vmatprep.subr.mxu0 0.0
        %1166 = vmatpush1.msra.mxu0 %v298
        %1167 = vmatprep.subr.mxu0 0.0
        %1168 = vmatpush1.msra.mxu0 %v299
        %1169 = vmatprep.subr.mxu0 0.0
        %1170 = vmatpush1.msra.mxu0 %v300
        %1171 = vmatprep.subr.mxu0 0.0
        %1172 = vmatpush1.msra.mxu0 %v301
        %1173 = vmatprep.subr.mxu0 0.0
        %1174 = vmatpush1.msra.mxu0 %v302
        %1175 = vmatprep.subr.mxu0 0.0
        %1176 = vmatpush1.msra.mxu0 %v303
        %1177 = vmatprep.subr.mxu0 0.0
        %1178 = vmatpush1.msra.mxu0 %v304
        %1179 = vmatprep.subr.mxu0 0.0
        %1180 = vmatpush1.msra.mxu0 %v305
        %1181 = vmatprep.subr.mxu0 0.0
        %1182 = vmatpush1.msra.mxu0 %v306
        %1183 = vmatprep.subr.mxu0 0.0
        %1184 = vmatpush1.msra.mxu0 %v307
        %1185 = vmatprep.subr.mxu0 0.0
        %1186 = vmatpush1.msra.mxu0 %v308
        %1187 = vmatprep.subr.mxu0 0.0
        %1188 = vmatpush1.msra.mxu0 %v309
        %1189 = vmatprep.subr.mxu0 0.0
        %1190 = vmatpush1.msra.mxu0 %v310
        %1191 = vmatprep.subr.mxu0 0.0
        %1192 = vmatpush1.msra.mxu0 %v311
        %1193 = vmatprep.subr.mxu0 0.0
        %1194 = vmatpush1.msra.mxu0 %v312
        %1195 = vmatprep.subr.mxu0 0.0
        %1196 = vmatpush1.msra.mxu0 %v313
        %1197 = vmatprep.subr.mxu0 0.0
        %1198 = vmatpush1.msra.mxu0 %v314
        %1199 = vmatprep.subr.mxu0 0.0
        %1200 = vmatpush1.msra.mxu0 %v315
        %1201 = vmatprep.subr.mxu0 0.0
        %1202 = vmatpush1.msra.mxu0 %v316
        %1203 = vmatprep.subr.mxu0 0.0
        %1204 = vmatpush1.msra.mxu0 %v317
        %1205 = vmatprep.subr.mxu0 0.0
        %1206 = vmatpush1.msra.mxu0 %v318
        %1207 = vmatprep.subr.mxu0 0.0
        %1208 = vmatpush1.msra.mxu0 %v319
        %1209 = vmatprep.subr.mxu0 0.0
        %1210 = vmatpush1.msra.mxu0 %v320
        %1211 = vmatprep.subr.mxu0 0.0
        %1212 = vmatpush1.msra.mxu0 %v321
        %1213 = vmatprep.subr.mxu0 0.0
        %1214 = vmatpush1.msra.mxu0 %v322
        %1215 = vmatprep.subr.mxu0 0.0
        %1216 = vmatpush1.msra.mxu0 %v323
        %1217 = vmatprep.subr.mxu0 0.0
        %1218 = vmatpush1.msra.mxu0 %v324
        %1219 = vmatprep.subr.mxu0 0.0
        %1220 = vmatpush1.msra.mxu0 %v325
        %1221 = vmatprep.subr.mxu0 0.0
        %1222 = vmatpush1.msra.mxu0 %v326
        %1223 = vmatprep.subr.mxu0 0.0
        %1224 = vmatpush1.msra.mxu0 %v327
        %1225 = vmatprep.subr.mxu0 0.0
        %1226 = vmatpush1.msra.mxu0 %v328
        %1227 = vmatprep.subr.mxu0 0.0
        %1228 = vmatpush1.msra.mxu0 %v329
        %1229 = vmatprep.mubr.f32.mxu0 %v1164
        %1230 = vmatmul.mubr.f32.gmra.mrb[0].mxu0 %v1163
        %v1231 = vpop.f32.mrb[0].mxu0
        %v1232 = vadd.f32 1e-05, %v1231
        %v1233 = vpop.f32.mrb[0].mxu0
        %1234 = vdwg.mxu0
        %v1235 = vrsqrt.pop %v1232
        %1237 = vset.pattern.permute.xlu0 0
        %1238 = vperm.xlu0 %1237, %v1235
        %v1239 = vpop.permute.xlu0 %1238
        %v1241 = vmul.f32 %v1161, %v1239
        %v1242 = vmul.f32 %v1162, %v1239
        %vm1243 = vcmp.ge.f32.partialorder %v1241, 0.0
        %vm1244 = vcmp.ge.f32.partialorder %v1242, 0.0
        %v1245 = vmul.f32 %v1241, 0.01
        %v1246 = vmul.f32 %v1242, 0.01
        %v1247 = vsel %vm1243, %v1241, %v1245
        %v1248 = vsel %vm1244, %v1242, %v1246
        %v1250 = vsel %vm859, %v348, 0
        %v1253 = vsel %vm859, %v349, 0
        %1255 = vmatprep.subr.mxu0 %v1248
        %1256 = vmatpush1.msra.mxu0 %v1247
        %1257 = vmatprep.subr.mxu0 0.0
        %1258 = vmatpush1.msra.mxu0 0.0
        %1259 = vmatprep.subr.mxu0 0.0
        %1260 = vmatpush1.msra.mxu0 0.0
        %1261 = vmatprep.subr.mxu0 0.0
        %1262 = vmatpush1.msra.mxu0 0.0
        %1263 = vmatprep.subr.mxu0 0.0
        %1264 = vmatpush1.msra.mxu0 0.0
        %1265 = vmatprep.subr.mxu0 0.0
        %1266 = vmatpush1.msra.mxu0 0.0
        %1267 = vmatprep.subr.mxu0 0.0
        %1268 = vmatpush1.msra.mxu0 0.0
        %1269 = vmatprep.subr.mxu0 0.0
        %1270 = vmatpush1.msra.mxu0 0.0
        %1271 = vmatprep.subr.mxu0 0.0
        %1272 = vmatpush1.msra.mxu0 0.0
        %1273 = vmatprep.subr.mxu0 0.0
        %1274 = vmatpush1.msra.mxu0 0.0
        %1275 = vmatprep.subr.mxu0 0.0
        %1276 = vmatpush1.msra.mxu0 0.0
        %1277 = vmatprep.subr.mxu0 0.0
        %1278 = vmatpush1.msra.mxu0 0.0
        %1279 = vmatprep.subr.mxu0 0.0
        %1280 = vmatpush1.msra.mxu0 0.0
        %1281 = vmatprep.subr.mxu0 0.0
        %1282 = vmatpush1.msra.mxu0 0.0
        %1283 = vmatprep.subr.mxu0 0.0
        %1284 = vmatpush1.msra.mxu0 0.0
        %1285 = vmatprep.subr.mxu0 0.0
        %1286 = vmatpush1.msra.mxu0 0.0
        %1287 = vmatprep.subr.mxu0 0.0
        %1288 = vmatpush1.msra.mxu0 0.0
        %1289 = vmatprep.subr.mxu0 0.0
        %1290 = vmatpush1.msra.mxu0 0.0
        %1291 = vmatprep.subr.mxu0 0.0
        %1292 = vmatpush1.msra.mxu0 0.0
        %1293 = vmatprep.subr.mxu0 0.0
        %1294 = vmatpush1.msra.mxu0 0.0
        %1295 = vmatprep.subr.mxu0 0.0
        %1296 = vmatpush1.msra.mxu0 0.0
        %1297 = vmatprep.subr.mxu0 0.0
        %1298 = vmatpush1.msra.mxu0 0.0
        %1299 = vmatprep.subr.mxu0 0.0
        %1300 = vmatpush1.msra.mxu0 0.0
        %1301 = vmatprep.subr.mxu0 0.0
        %1302 = vmatpush1.msra.mxu0 0.0
        %1303 = vmatprep.subr.mxu0 0.0
        %1304 = vmatpush1.msra.mxu0 0.0
        %1305 = vmatprep.subr.mxu0 0.0
        %1306 = vmatpush1.msra.mxu0 0.0
        %1307 = vmatprep.subr.mxu0 0.0
        %1308 = vmatpush1.msra.mxu0 0.0
        %1309 = vmatprep.subr.mxu0 0.0
        %1310 = vmatpush1.msra.mxu0 0.0
        %1311 = vmatprep.subr.mxu0 0.0
        %1312 = vmatpush1.msra.mxu0 0.0
        %1313 = vmatprep.subr.mxu0 0.0
        %1314 = vmatpush1.msra.mxu0 0.0
        %1315 = vmatprep.subr.mxu0 0.0
        %1316 = vmatpush1.msra.mxu0 0.0
        %1317 = vmatprep.subr.mxu0 0.0
        %1318 = vmatpush1.msra.mxu0 0.0
        %1319 = vmatprep.mubr.f32.mxu0 0.0
        %1320 = vmatmul.mubr.f32.gmra.mrb[0].mxu0 %v1250
        %v1321 = vpop.f32.mrb[0].mxu0
        %v1322 = vadd.f32 0.0, %v1321
        %v1323 = vpop.f32.mrb[0].mxu0
        %v1324 = vadd.f32 0.0, %v1323
        %1325 = vmatprep.mubr.f32.mxu0 0.0
        %1326 = vmatmul.mubr.f32.gmra.mrb[0].mxu0 %v1253
        %v1327 = vpop.f32.mrb[0].mxu0
        %v1328 = vadd.f32 0.0, %v1327
        %v1329 = vpop.f32.mrb[0].mxu0
        %v1330 = vadd.f32 0.0, %v1329
        %1331 = vdwg.mxu0
        %v1332 = vlaneseq
        %v1333 = vshrl.u32 %v1332, 7
        %v1334 = vsub.s32 0, %v1333
        %v1335 = vrot.slane %v294, %v1334
        %v1336 = vlaneseq
        %v1337 = vshrl.u32 %v1336, 7
        %v1338 = vsub.s32 0, %v1337
        %v1339 = vrot.slane %v295, %v1338
        %v1340 = vmul.f32 %v1335, %v1322
        %v1341 = vmul.f32 %v1339, %v1324
        %1343 = vset.pattern.permute.xlu0 0
        %1344 = vperm.xlu0 %1343, %v350
        %v1345 = vpop.permute.xlu0 %1344
        %v1347 = vadd.f32 %v1345, %v1340
        %v1348 = vadd.f32 %v1345, %v1341
        %v1351 = vrot.slane %v1322, 4
        %v1352 = vrot.slane %v1324, 4
        %1355 = vrot.lane.b32.xlu0 %v1351, 1
        %v1356 = vpop.permute.xlu0 %1355
        %1357 = vrot.lane.b32.xlu0 %v1352, 1
        %v1358 = vpop.permute.xlu0 %1357
        %vm1359 = vcmp.lt.s32.totalorder %v360, 1
        %v1360 = vsel %vm1359, %v1356, %v1358
        %v1361 = vsel %vm1359, %v1358, %v1356
        %v1362 = vlaneseq
        %v1363 = vshrl.u32 %v1362, 7
        %v1364 = vsub.s32 1, %v1363
        %v1365 = vrot.slane %v296, %v1364
        %v1366 = vlaneseq
        %v1367 = vshrl.u32 %v1366, 7
        %v1368 = vsub.s32 1, %v1367
        %v1369 = vrot.slane %v297, %v1368
        %v1370 = vmul.f32 %v1365, %v1361
        %v1371 = vmul.f32 %v1369, %v1360
        %v1372 = vadd.f32 %v1347, %v1370
        %v1373 = vadd.f32 %v1348, %v1371
        %1374 = vrot.lane.b32.xlu0 %v1328, 16
        %v1375 = vpop.permute.xlu0 %1374
        %1376 = vrot.lane.b32.xlu0 %v1330, 16
        %v1377 = vpop.permute.xlu0 %1376
        %vm1378 = vcmp.lt.s32.totalorder %v360, 16
        %v1379 = vsel %vm1378, %v1375, %v1377
        %v1380 = vsel %vm1378, %v1377, %v1375
        %v1381 = vlaneseq
        %v1382 = vshrl.u32 %v1381, 7
        %v1383 = vsub.s32 2, %v1382
        %v1384 = vrot.slane %v296, %v1383
        %v1385 = vlaneseq
        %v1386 = vshrl.u32 %v1385, 7
        %v1387 = vsub.s32 2, %v1386
        %v1388 = vrot.slane %v297, %v1387
        %v1389 = vmul.f32 %v1384, %v1380
        %v1390 = vmul.f32 %v1388, %v1379
        %v1391 = vadd.f32 %v1372, %v1389
        %v1392 = vadd.f32 %v1373, %v1390
        %v1395 = vrot.slane %v1328, 4
        %v1396 = vrot.slane %v1330, 4
        %1399 = vrot.lane.b32.xlu0 %v1395, 17
        %v1400 = vpop.permute.xlu0 %1399
        %1401 = vrot.lane.b32.xlu0 %v1396, 17
        %v1402 = vpop.permute.xlu0 %1401
        %vm1403 = vcmp.lt.s32.totalorder %v360, 17
        %v1404 = vsel %vm1403, %v1400, %v1402
        %v1405 = vsel %vm1403, %v1402, %v1400
        %v1406 = vlaneseq
        %v1407 = vshrl.u32 %v1406, 7
        %v1408 = vsub.s32 3, %v1407
        %v1409 = vrot.slane %v296, %v1408
        %v1410 = vlaneseq
        %v1411 = vshrl.u32 %v1410, 7
        %v1412 = vsub.s32 3, %v1411
        %v1413 = vrot.slane %v297, %v1412
        %v1414 = vmul.f32 %v1409, %v1405
        %v1415 = vmul.f32 %v1413, %v1404
        %v1416 = vadd.f32 %v1391, %v1414
        %v1417 = vadd.f32 %v1392, %v1415
        %v1420 = vrot.slane %v1416, 4
        %v1421 = vrot.slane %v1417, 4
        %v1424 = vsel %vm420, %v351, %v1420
        %v1425 = vsel %vm420, %v353, %v1421
        %1426 = vst [vmem:[%s293] sm:$0xff] %v1424
        %1427 = vst [vmem:[%s293 + $0x8] sm:$0xff] %v1425
        %p1428 = scmp.lt.s32.totalorder %s19, 1
        %s1429 = scalar_select %p1428, %s19, 1
        %s1430 = smul.addr %s1429, 2
        %s1431 = smul.addr %s1430, 8
        %s1432 = scalar_lea.vmem %s7, %s1431
        // Predicated region
        $region53: #{unet_skip_block_innermost.1} parent=47 // pred_check
          %p1433 = pneg %p189
        $region54: #{unet_skip_block_innermost.1} parent=47 // pred_check_branch
          %1435 = sbr.rel (%p1433) target = $region56
        $region55: #{unet_skip_block_innermost.1} parent=47 // pred_region
          _
        $region56: #{unet_skip_block_innermost.1} parent=47 // pred_fallthru
          _
      $region48: #{unet_skip_block_innermost.1} parent=5 // pred_fallthru
        _
      %p1436 = scmp.le.s32.totalorder 2, %s14
      // Predicated region
      $region57: #{unet_skip_block_innermost.1} parent=5 // pred_check
        %p1437 = pneg %p1436
      $region58: #{unet_skip_block_innermost.1} parent=5 // pred_check_branch
        %1439 = sbr.rel (%p1437) target = $region60
      $region59: #{unet_skip_block_innermost.1} parent=5 // pred_region
        %s1440 = ssub.s32 %s14, 2
        // Predicated region
        $region61: #{unet_skip_block_innermost.1} parent=59 // pred_check
          %p1441 = pneg %p195
        $region62: #{unet_skip_block_innermost.1} parent=59 // pred_check_branch
          %1443 = sbr.rel (%p1441) target = $region64
        $region63: #{unet_skip_block_innermost.1} parent=59 // pred_region
          %p1444 = scmp.lt.s32.totalorder %s20, 1
          %s1445 = scalar_select %p1444, %s20, 1
          %s1446 = smul.addr %s1445, 2
          %s1447 = smul.addr %s1446, 8
          %s1448 = scalar_lea.vmem %s7, %s1447
        $region64: #{unet_skip_block_innermost.1} parent=59 // pred_fallthru
          _
      $region60: #{unet_skip_block_innermost.1} parent=5 // pred_fallthru
        _
    $region6: #{unet_skip_block_innermost.1} parent=1 // loop_footer
      %s18 = sadd.s32 1, %s14
    $region7: #{unet_skip_block_innermost.1} parent=1 // loop_footer_branch
      %13 = sbr.rel target = $region3
    $region8: #{unet_skip_block_innermost.1} parent=1 // loop_exit
      _
    %1449 = vsyncpa [#allocation3], 1
    %s1450 = scalar_lea.sflag [#allocation3], 1
    %1451 = vsyncpa %s1450, 1

</llo_original>
